<compile_context>
chip_gen: v7x
topology: tpu7x:2x2x1
jax: 0.10.0
libtpu: 0.0.40
codegen_flags: <defaults>
</compile_context>

<pallas_src>
import numpy as np
import jax
import jax.numpy as jnp
from jax.experimental import pallas as pl
from jax.experimental.pallas import tpu as pltpu

# Use the MXU for the 1x1 pointwise / skip convs once Cin is big enough; keep
# unrolled sublane-broadcast VPU FMAs only for tiny channel counts.
_MXU_MIN_CIN = 8


# ---------------------------------------------------------------------------
# Fused block kernel (generated per static configuration)
# ---------------------------------------------------------------------------

def _make_block_kernel(n_sep, has_skip, use_pool, W, lanes, compute_dtype):
    """Fused kernel for one (reps, skip, stride!=1, W, lane-count) config.

    In-kernel layout: (C, LANES) with LANES = B*H*W -- channels on sublanes,
    B images side-by-side along the lane-dense flattened spatial axis.  3x3
    stencils use pltpu.roll lane rotations (XLU) + host-precomputed 0/1 edge
    masks; padding / image boundaries are handled purely by masking.
    """

    def _shift(a, s):
        # y[:, i] = a[:, i + s]; wrapped / cross-image lanes are killed by the
        # edge masks.
        if s == 0:
            return a
        return pltpu.roll(a, (lanes - s) % lanes, axis=1)

    def _pointwise(wT, a):
        # (Cout, Cin) x (Cin, L) -> (Cout, L): MXU for real channel counts,
        # VPU broadcast-FMAs only for tiny Cin.
        cin, L = a.shape
        if cin >= _MXU_MIN_CIN:
            return jnp.dot(wT.astype(compute_dtype), a.astype(compute_dtype),
                           preferred_element_type=jnp.float32)
        out = jnp.zeros((wT.shape[0], L), jnp.float32)
        for ci in range(cin):
            out = out + wT[:, ci:ci + 1] * a[ci:ci + 1, :]
        return out

    def kernel(*refs):
        # ---- unpack refs (inputs ..., output) -----------------------------
        pos = 0
        x_ref = refs[pos]; pos += 1
        mask_ref = refs[pos]; pos += 1
        sep_refs = []
        for _ in range(n_sep):
            sep_refs.append((refs[pos], refs[pos + 1], refs[pos + 2]))
            pos += 3
        if has_skip:
            skip_w_ref, skip_sh_ref = refs[pos], refs[pos + 1]
            pos += 2
        if use_pool:
            neg_ref, s_ref = refs[pos], refs[pos + 1]
            pos += 2
        o_ref = refs[pos]

        x = x_ref[...]                      # (Cin0, LANES)
        masks = mask_ref[...]               # (9, LANES) 0/1, host precomputed

        def sepconv(a, dwT, pwT, sh):
            # depthwise 3x3 (zero padding == masked taps); the center tap
            # (k == 4) is always valid -> no mask multiply.
            acc = a * dwT[:, 4:5]
            for k in range(9):
                if k == 4:
                    continue
                s = (k // 3 - 1) * W + (k % 3 - 1)
                acc = acc + (_shift(a, s) * masks[k:k + 1, :]) * dwT[:, k:k + 1]
            # pointwise 1x1 (+ folded BN scale) and folded BN shift.
            return _pointwise(pwT, acc) + sh

        # ---- main branch: [ReLU -> SepConv] * reps ------------------------
        # (the spec's block always starts with an in-place ReLU)
        h = x
        for dwT_ref, pwT_ref, sh_ref in sep_refs:
            h = jnp.maximum(h, 0.0)
            h = sepconv(h, dwT_ref[...], pwT_ref[...], sh_ref[...])

        # ---- 3x3 max-pool, stride applied by a 0/1 selection matmul -------
        if use_pool:
            neg = neg_ref[...]              # 0 where valid, -1e30 where padded
            S = s_ref[...]                  # (LANES, OUT_LANES) block-diag 0/1
            m = h                           # center tap
            for k in range(9):
                if k == 4:
                    continue
                s = (k // 3 - 1) * W + (k % 3 - 1)
                # TODO(synk): additive -1e30 sentinel; fine for finite
                # activations but not robust to inf/NaN inputs.
                cand = _shift(h, s) * masks[k:k + 1, :] + neg[k:k + 1, :]
                m = jnp.maximum(m, cand)
            h = jnp.dot(m, S, preferred_element_type=jnp.float32)

        # ---- skip path: BN(1x1 strided conv(relu(x))) ----------------------
        # The spec's first nn.ReLU(inplace=True) mutates the block input, so
        # the skip conv sees relu(x).
        if has_skip:
            rx = jnp.maximum(x, 0.0)
            xs = (jnp.dot(rx, S, preferred_element_type=jnp.float32)
                  if use_pool else rx)
            h = h + _pointwise(skip_w_ref[...], xs) + skip_sh_ref[...]

        o_ref[...] = h.astype(o_ref.dtype)

    return kernel


# ---------------------------------------------------------------------------
# Host-side constants (edge masks, pad bias, stride-selection matrix)
# ---------------------------------------------------------------------------

def _edge_masks(H, W, B):
    """(9, B*H*W) 0/1 tap-validity masks + maxpool pad bias (0 / -1e30)."""
    HW = H * W
    pos = np.arange(B * HW) % HW
    hh, ww = pos // W, pos % W
    masks = np.zeros((9, B * HW), np.float32)
    for k in range(9):
        dh, dw = k // 3 - 1, k % 3 - 1
        masks[k] = ((hh + dh >= 0) & (hh + dh < H) &
                    (ww + dw >= 0) & (ww + dw < W)).astype(np.float32)
    neg = (masks - 1.0) * 1e30
    return jnp.asarray(masks), jnp.asarray(neg)


def _decimation_matrix(H, W, Ho, Wo, stride, B):
    """Block-diagonal 0/1 matrix (B*H*W, B*Ho*Wo) picking strided positions."""
    HW, HoWo = H * W, Ho * Wo
    S = np.zeros((B * HW, B * HoWo), np.float32)
    i = np.arange(HoWo)
    src = (i // Wo) * (stride * W) + (i % Wo) * stride
    for b in range(B):
        S[b * HW + src, b * HoWo + i] = 1.0
    return jnp.asarray(S)


def _pick_batch_per_step(N, out_lanes_per_image):
    """Smallest divisor B of N making the output slab >= 128 lanes wide."""
    for b in range(1, N + 1):
        if N % b == 0 and b * out_lanes_per_image >= 128:
            return b
    return N


# ---------------------------------------------------------------------------
# Deterministic parameter initialization + module wrapper
# ---------------------------------------------------------------------------

def _fold_bn(gamma, beta, mean, var, eps=1e-5):
    scale = gamma / jnp.sqrt(var + eps)
    shift = beta - mean * scale
    return (scale.reshape(1, -1).astype(jnp.float32),
            shift.reshape(1, -1).astype(jnp.float32))


def _init_bn(key, c):
    k1, k2, k3, k4 = jax.random.split(key, 4)
    gamma = 1.0 + 0.1 * jax.random.normal(k1, (c,), jnp.float32)
    beta = 0.1 * jax.random.normal(k2, (c,), jnp.float32)
    mean = 0.1 * jax.random.normal(k3, (c,), jnp.float32)
    var = 0.5 + jnp.abs(jax.random.normal(k4, (c,), jnp.float32))
    return _fold_bn(gamma, beta, mean, var)


def _init_sep(key, cin, cout):
    k1, k2, k3 = jax.random.split(key, 3)
    dw = 0.2 * jax.random.normal(k1, (9, cin), jnp.float32)         # (kh*3+kw, c)
    pw = (1.0 / jnp.sqrt(cin)) * jax.random.normal(k2, (cin, cout), jnp.float32)
    scale, shift = _init_bn(k3, cout)
    return dw, pw, scale, shift


class XceptionBlockPallas:
    def __init__(self, key, in_channels, out_channels, reps, stride=1,
                 grow_first=True, compute_dtype=jnp.float32):
        # compute_dtype: dtype of MXU matmul operands (accumulation always
        # f32).  Keep f32 on v5e; bf16 recommended on v6e / v7x.
        self.stride = stride
        self.out_channels = out_channels
        self.has_skip = (out_channels != in_channels) or (stride != 1)
        self.compute_dtype = compute_dtype
        keys = jax.random.split(key, reps + 3)
        self._kidx = 0

        def nk():
            k = keys[self._kidx]
            self._kidx += 1
            return k

        self.seps = []
        filters = in_channels
        if grow_first:
            self.seps.append(_init_sep(nk(), in_channels, out_channels))
            filters = out_channels
        for _ in range(reps - 1):
            self.seps.append(_init_sep(nk(), filters, filters))
        if not grow_first:
            self.seps.append(_init_sep(nk(), in_channels, out_channels))

        if self.has_skip:
            self.skip_w = (1.0 / jnp.sqrt(in_channels)) * jax.random.normal(
                nk(), (in_channels, out_channels), jnp.float32)
            self.skip_scale, self.skip_shift = _init_bn(nk(), out_channels)

        # Kernel-layout params: depthwise taps as (Cin, 9) columns; pointwise
        # weights transposed with the BN scale folded in; BN shift as (Cout,1).
        self.k_seps = []
        for dw, pw, sc, sh in self.seps:
            self.k_seps.append((jnp.transpose(dw),
                                jnp.transpose(pw * sc),
                                jnp.transpose(sh)))
        if self.has_skip:
            self.k_skip_w = jnp.transpose(self.skip_w * self.skip_scale)
            self.k_skip_sh = jnp.transpose(self.skip_shift)

    def __call__(self, x_nchw):
        N, Cin, H, W = x_nchw.shape
        Cout = self.out_channels
        use_pool = self.stride != 1
        if use_pool:
            Ho = (H - 1) // self.stride + 1
            Wo = (W - 1) // self.stride + 1
        else:
            Ho, Wo = H, W
        HW, HoWo = H * W, Ho * Wo

        # Batch B images per grid step so the per-step output slab is >= 128
        # lanes wide (unmasked stores) while keeping grid = N // B > 1 when
        # possible (keeps both v7x TensorCores busy).  At the toy sizes here
        # VMEM is nowhere near the 64 MiB v7x budget.
        B = _pick_batch_per_step(N, HoWo)
        G = N // B
        LANES = B * HW
        OUT_LANES = B * HoWo

        # NCHW -> (G, C, B*H*W): the B images of a step are laid side-by-side
        # along the lane axis (lane index = b*HW + flat_spatial).
        x2d = (x_nchw.astype(jnp.float32)
               .reshape(G, B, Cin, HW)
               .transpose(0, 2, 1, 3)
               .reshape(G, Cin, LANES))

        masks, neg = _edge_masks(H, W, B)

        inputs = [x2d, masks]
        in_specs = [pl.BlockSpec((None, Cin, LANES), lambda n: (n, 0, 0)),
                    pl.BlockSpec(masks.shape, lambda n: (0, 0))]

        def add_const(arr):
            inputs.append(arr)
            in_specs.append(pl.BlockSpec(arr.shape, lambda n: (0, 0)))

        for dwT, pwT, shc in self.k_seps:
            add_const(dwT)
            add_const(pwT)
            add_const(shc)
        if self.has_skip:
            add_const(self.k_skip_w)
            add_const(self.k_skip_sh)
        if use_pool:
            add_const(neg)
            add_const(_decimation_matrix(H, W, Ho, Wo, self.stride, B))

        kernel = _make_block_kernel(len(self.k_seps), self.has_skip, use_pool,
                                    W, LANES, self.compute_dtype)
        out2d = pl.pallas_call(
            kernel,
            out_shape=jax.ShapeDtypeStruct((G, Cout, OUT_LANES), jnp.float32),
            grid=(G,),
            in_specs=in_specs,
            out_specs=pl.BlockSpec((None, Cout, OUT_LANES), lambda n: (n, 0, 0)),
            compiler_params=pltpu.CompilerParams(
                dimension_semantics=("parallel",)),
        )(*inputs)

        return (out2d.reshape(G, Cout, B, HoWo)
                .transpose(0, 2, 1, 3)
                .reshape(N, Cout, Ho, Wo))


# ---------------------------------------------------------------------------
# Pure-JAX reference (lax convs) for validation
# ---------------------------------------------------------------------------

def _reference_forward(block, x_nchw):
    x = jnp.transpose(x_nchw, (0, 2, 3, 1)).astype(jnp.float32)
    h = x
    for dw, pw, sc, sh in block.seps:
        h = jnp.maximum(h, 0.0)
        cin = dw.shape[1]
        cout = pw.shape[1]
        h = jax.lax.conv_general_dilated(
            h, dw.reshape(3, 3, 1, cin), (1, 1), ((1, 1), (1, 1)),
            dimension_numbers=("NHWC", "HWIO", "NHWC"),
            feature_group_count=cin, precision=jax.lax.Precision.HIGHEST)
        h = jax.lax.conv_general_dilated(
            h, pw.reshape(1, 1, cin, cout), (1, 1), "VALID",
            dimension_numbers=("NHWC", "HWIO", "NHWC"),
            precision=jax.lax.Precision.HIGHEST)
        h = h * sc.reshape(1, 1, 1, cout) + sh.reshape(1, 1, 1, cout)
    if block.stride != 1:
        h = jax.lax.reduce_window(
            h, -jnp.inf, jax.lax.max, (1, 3, 3, 1),
            (1, block.stride, block.stride, 1),
            ((0, 0), (1, 1), (1, 1), (0, 0)))
    if block.has_skip:
        xs = jnp.maximum(x, 0.0)[:, ::block.stride, ::block.stride, :]
        s = jnp.einsum("nhwc,co->nhwo", xs, block.skip_w,
                       precision=jax.lax.Precision.HIGHEST)
        s = s * block.skip_scale.reshape(1, 1, 1, -1) \
              + block.skip_shift.reshape(1, 1, 1, -1)
        h = h + s
    return jnp.transpose(h, (0, 3, 1, 2))


# ---------------------------------------------------------------------------

if __name__ == "__main__":
    key = jax.random.PRNGKey(0)
    kparam, kx, kparam2, kx2 = jax.random.split(key, 4)

    # --- entry-flow style block: stride 2, channel growth, skip branch -----
    N, Cin, H, W = 4, 4, 16, 16
    Cout, reps, stride = 8, 2, 2

    x = jax.random.normal(kx, (N, Cin, H, W), jnp.float32)
    block = XceptionBlockPallas(kparam, Cin, Cout, reps,
                                stride=stride, grow_first=True)

    out = jax.block_until_ready(block(x))
    ref = jax.block_until_ready(_reference_forward(block, x))

    assert out.shape == (N, Cout, H // stride, W // stride), out.shape
    if not bool(jnp.allclose(out, ref, rtol=2e-2, atol=2e-2)):
        raise AssertionError(
            f"entry block mismatch, max abs err = {jnp.max(jnp.abs(out - ref))}")

    # --- middle-flow style block: stride 1, in==out, no skip, MXU pointwise -
    N2, C2, reps2 = 4, 8, 3
    x2 = jax.random.normal(kx2, (N2, C2, H, W), jnp.float32)
    block2 = XceptionBlockPallas(kparam2, C2, C2, reps2,
                                 stride=1, grow_first=True)

    out2 = jax.block_until_ready(block2(x2))
    ref2 = jax.block_until_ready(_reference_forward(block2, x2))

    assert out2.shape == (N2, C2, H, W), out2.shape
    if not bool(jnp.allclose(out2, ref2, rtol=2e-2, atol=2e-2)):
        raise AssertionError(
            f"middle block mismatch, max abs err = {jnp.max(jnp.abs(out2 - ref2))}")

    print("KERNEL_OK")
</pallas_src>

<mosaic_0001>
module attributes {stable_mosaic.version = 11 : i64} {
  func.func @kernel(%arg0: i32, %arg1: memref<1x4x512xf32, #tpu.memory_space<vmem>>, %arg2: memref<9x512xf32, #tpu.memory_space<vmem>>, %arg3: memref<4x9xf32, #tpu.memory_space<vmem>>, %arg4: memref<8x4xf32, #tpu.memory_space<vmem>>, %arg5: memref<8x1xf32, #tpu.memory_space<vmem>>, %arg6: memref<8x9xf32, #tpu.memory_space<vmem>>, %arg7: memref<8x8xf32, #tpu.memory_space<vmem>>, %arg8: memref<8x1xf32, #tpu.memory_space<vmem>>, %arg9: memref<8x4xf32, #tpu.memory_space<vmem>>, %arg10: memref<8x1xf32, #tpu.memory_space<vmem>>, %arg11: memref<9x512xf32, #tpu.memory_space<vmem>>, %arg12: memref<512x128xf32, #tpu.memory_space<vmem>>, %arg13: memref<1x8x128xf32, #tpu.memory_space<vmem>>) attributes {dimension_semantics = [#tpu.dimension_semantics<parallel>], iteration_bounds = array<i64: 2>, scalar_prefetch = 0 : i64, scratch_operands = 0 : i64, tpu.core_type = #tpu.core_type<tc>, window_params = [{transform_indices = @transform_0, window_bounds = array<i64: 1, 4, 512>}, {pipeline_mode = #tpu.pipeline_mode<synchronous>, transform_indices = @transform_1, window_bounds = array<i64: 9, 512>}, {pipeline_mode = #tpu.pipeline_mode<synchronous>, transform_indices = @transform_2, window_bounds = array<i64: 4, 9>}, {pipeline_mode = #tpu.pipeline_mode<synchronous>, transform_indices = @transform_3, window_bounds = array<i64: 8, 4>}, {pipeline_mode = #tpu.pipeline_mode<synchronous>, transform_indices = @transform_4, window_bounds = array<i64: 8, 1>}, {pipeline_mode = #tpu.pipeline_mode<synchronous>, transform_indices = @transform_5, window_bounds = array<i64: 8, 9>}, {pipeline_mode = #tpu.pipeline_mode<synchronous>, transform_indices = @transform_6, window_bounds = array<i64: 8, 8>}, {pipeline_mode = #tpu.pipeline_mode<synchronous>, transform_indices = @transform_7, window_bounds = array<i64: 8, 1>}, {pipeline_mode = #tpu.pipeline_mode<synchronous>, transform_indices = @transform_8, window_bounds = array<i64: 8, 4>}, {pipeline_mode = #tpu.pipeline_mode<synchronous>, transform_indices = @transform_9, window_bounds = array<i64: 8, 1>}, {pipeline_mode = #tpu.pipeline_mode<synchronous>, transform_indices = @transform_10, window_bounds = array<i64: 9, 512>}, {pipeline_mode = #tpu.pipeline_mode<synchronous>, transform_indices = @transform_11, window_bounds = array<i64: 512, 128>}, {transform_indices = @transform_12, window_bounds = array<i64: 1, 8, 128>}]} {
    %c0 = arith.constant 0 : index
    %c0_0 = arith.constant 0 : index
    %c0_1 = arith.constant 0 : index
    %0 = vector.load %arg1[%c0, %c0_0, %c0_1] : memref<1x4x512xf32, #tpu.memory_space<vmem>>, vector<1x4x512xf32>
    %1 = vector.shape_cast %0 : vector<1x4x512xf32> to vector<4x512xf32>
    %c0_2 = arith.constant 0 : index
    %c0_3 = arith.constant 0 : index
    %2 = vector.load %arg2[%c0_2, %c0_3] : memref<9x512xf32, #tpu.memory_space<vmem>>, vector<9x512xf32>
    %cst = arith.constant 0.000000e+00 : f32
    %3 = vector.broadcast %cst : f32 to vector<4x512xf32>
    %4 = arith.maximumf %1, %3 : vector<4x512xf32>
    %c0_4 = arith.constant 0 : index
    %c0_5 = arith.constant 0 : index
    %5 = vector.load %arg3[%c0_4, %c0_5] : memref<4x9xf32, #tpu.memory_space<vmem>>, vector<4x9xf32>
    %c0_6 = arith.constant 0 : index
    %c0_7 = arith.constant 0 : index
    %6 = vector.load %arg4[%c0_6, %c0_7] : memref<8x4xf32, #tpu.memory_space<vmem>>, vector<8x4xf32>
    %c0_8 = arith.constant 0 : index
    %c0_9 = arith.constant 0 : index
    %7 = vector.load %arg5[%c0_8, %c0_9] : memref<8x1xf32, #tpu.memory_space<vmem>>, vector<8x1xf32>
    %8 = vector.extract_strided_slice %5 {offsets = [0, 4], sizes = [4, 1], strides = [1, 1]} : vector<4x9xf32> to vector<4x1xf32>
    %9 = vector.broadcast %8 : vector<4x1xf32> to vector<4x512xf32>
    %10 = arith.mulf %4, %9 : vector<4x512xf32>
    %c17_i32 = arith.constant 17 : i32
    %11 = tpu.dynamic_rotate %4 by %c17_i32 dim 1 : vector<4x512xf32>, i32 -> vector<4x512xf32>
    %12 = vector.extract_strided_slice %2 {offsets = [0, 0], sizes = [1, 512], strides = [1, 1]} : vector<9x512xf32> to vector<1x512xf32>
    %13 = vector.broadcast %12 : vector<1x512xf32> to vector<4x512xf32>
    %14 = arith.mulf %11, %13 : vector<4x512xf32>
    %15 = vector.extract_strided_slice %5 {offsets = [0, 0], sizes = [4, 1], strides = [1, 1]} : vector<4x9xf32> to vector<4x1xf32>
    %16 = vector.broadcast %15 : vector<4x1xf32> to vector<4x512xf32>
    %17 = arith.mulf %14, %16 : vector<4x512xf32>
    %18 = arith.addf %10, %17 : vector<4x512xf32>
    %c16_i32 = arith.constant 16 : i32
    %19 = tpu.dynamic_rotate %4 by %c16_i32 dim 1 : vector<4x512xf32>, i32 -> vector<4x512xf32>
    %20 = vector.extract_strided_slice %2 {offsets = [1, 0], sizes = [1, 512], strides = [1, 1]} : vector<9x512xf32> to vector<1x512xf32>
    %21 = vector.broadcast %20 : vector<1x512xf32> to vector<4x512xf32>
    %22 = arith.mulf %19, %21 : vector<4x512xf32>
    %23 = vector.extract_strided_slice %5 {offsets = [0, 1], sizes = [4, 1], strides = [1, 1]} : vector<4x9xf32> to vector<4x1xf32>
    %24 = vector.broadcast %23 : vector<4x1xf32> to vector<4x512xf32>
    %25 = arith.mulf %22, %24 : vector<4x512xf32>
    %26 = arith.addf %18, %25 : vector<4x512xf32>
    %c15_i32 = arith.constant 15 : i32
    %27 = tpu.dynamic_rotate %4 by %c15_i32 dim 1 : vector<4x512xf32>, i32 -> vector<4x512xf32>
    %28 = vector.extract_strided_slice %2 {offsets = [2, 0], sizes = [1, 512], strides = [1, 1]} : vector<9x512xf32> to vector<1x512xf32>
    %29 = vector.broadcast %28 : vector<1x512xf32> to vector<4x512xf32>
    %30 = arith.mulf %27, %29 : vector<4x512xf32>
    %31 = vector.extract_strided_slice %5 {offsets = [0, 2], sizes = [4, 1], strides = [1, 1]} : vector<4x9xf32> to vector<4x1xf32>
    %32 = vector.broadcast %31 : vector<4x1xf32> to vector<4x512xf32>
    %33 = arith.mulf %30, %32 : vector<4x512xf32>
    %34 = arith.addf %26, %33 : vector<4x512xf32>
    %c1_i32 = arith.constant 1 : i32
    %35 = tpu.dynamic_rotate %4 by %c1_i32 dim 1 : vector<4x512xf32>, i32 -> vector<4x512xf32>
    %36 = vector.extract_strided_slice %2 {offsets = [3, 0], sizes = [1, 512], strides = [1, 1]} : vector<9x512xf32> to vector<1x512xf32>
    %37 = vector.broadcast %36 : vector<1x512xf32> to vector<4x512xf32>
    %38 = arith.mulf %35, %37 : vector<4x512xf32>
    %39 = vector.extract_strided_slice %5 {offsets = [0, 3], sizes = [4, 1], strides = [1, 1]} : vector<4x9xf32> to vector<4x1xf32>
    %40 = vector.broadcast %39 : vector<4x1xf32> to vector<4x512xf32>
    %41 = arith.mulf %38, %40 : vector<4x512xf32>
    %42 = arith.addf %34, %41 : vector<4x512xf32>
    %c511_i32 = arith.constant 511 : i32
    %43 = tpu.dynamic_rotate %4 by %c511_i32 dim 1 : vector<4x512xf32>, i32 -> vector<4x512xf32>
    %44 = vector.extract_strided_slice %2 {offsets = [5, 0], sizes = [1, 512], strides = [1, 1]} : vector<9x512xf32> to vector<1x512xf32>
    %45 = vector.broadcast %44 : vector<1x512xf32> to vector<4x512xf32>
    %46 = arith.mulf %43, %45 : vector<4x512xf32>
    %47 = vector.extract_strided_slice %5 {offsets = [0, 5], sizes = [4, 1], strides = [1, 1]} : vector<4x9xf32> to vector<4x1xf32>
    %48 = vector.broadcast %47 : vector<4x1xf32> to vector<4x512xf32>
    %49 = arith.mulf %46, %48 : vector<4x512xf32>
    %50 = arith.addf %42, %49 : vector<4x512xf32>
    %c497_i32 = arith.constant 497 : i32
    %51 = tpu.dynamic_rotate %4 by %c497_i32 dim 1 : vector<4x512xf32>, i32 -> vector<4x512xf32>
    %52 = vector.extract_strided_slice %2 {offsets = [6, 0], sizes = [1, 512], strides = [1, 1]} : vector<9x512xf32> to vector<1x512xf32>
    %53 = vector.broadcast %52 : vector<1x512xf32> to vector<4x512xf32>
    %54 = arith.mulf %51, %53 : vector<4x512xf32>
    %55 = vector.extract_strided_slice %5 {offsets = [0, 6], sizes = [4, 1], strides = [1, 1]} : vector<4x9xf32> to vector<4x1xf32>
    %56 = vector.broadcast %55 : vector<4x1xf32> to vector<4x512xf32>
    %57 = arith.mulf %54, %56 : vector<4x512xf32>
    %58 = arith.addf %50, %57 : vector<4x512xf32>
    %c496_i32 = arith.constant 496 : i32
    %59 = tpu.dynamic_rotate %4 by %c496_i32 dim 1 : vector<4x512xf32>, i32 -> vector<4x512xf32>
    %60 = vector.extract_strided_slice %2 {offsets = [7, 0], sizes = [1, 512], strides = [1, 1]} : vector<9x512xf32> to vector<1x512xf32>
    %61 = vector.broadcast %60 : vector<1x512xf32> to vector<4x512xf32>
    %62 = arith.mulf %59, %61 : vector<4x512xf32>
    %63 = vector.extract_strided_slice %5 {offsets = [0, 7], sizes = [4, 1], strides = [1, 1]} : vector<4x9xf32> to vector<4x1xf32>
    %64 = vector.broadcast %63 : vector<4x1xf32> to vector<4x512xf32>
    %65 = arith.mulf %62, %64 : vector<4x512xf32>
    %66 = arith.addf %58, %65 : vector<4x512xf32>
    %c495_i32 = arith.constant 495 : i32
    %67 = tpu.dynamic_rotate %4 by %c495_i32 dim 1 : vector<4x512xf32>, i32 -> vector<4x512xf32>
    %68 = vector.extract_strided_slice %2 {offsets = [8, 0], sizes = [1, 512], strides = [1, 1]} : vector<9x512xf32> to vector<1x512xf32>
    %69 = vector.broadcast %68 : vector<1x512xf32> to vector<4x512xf32>
    %70 = arith.mulf %67, %69 : vector<4x512xf32>
    %71 = vector.extract_strided_slice %5 {offsets = [0, 8], sizes = [4, 1], strides = [1, 1]} : vector<4x9xf32> to vector<4x1xf32>
    %72 = vector.broadcast %71 : vector<4x1xf32> to vector<4x512xf32>
    %73 = arith.mulf %70, %72 : vector<4x512xf32>
    %74 = arith.addf %66, %73 : vector<4x512xf32>
    %cst_10 = arith.constant 0.000000e+00 : f32
    %75 = vector.broadcast %cst_10 : f32 to vector<8x512xf32>
    %76 = vector.extract_strided_slice %6 {offsets = [0, 0], sizes = [8, 1], strides = [1, 1]} : vector<8x4xf32> to vector<8x1xf32>
    %77 = vector.extract_strided_slice %74 {offsets = [0, 0], sizes = [1, 512], strides = [1, 1]} : vector<4x512xf32> to vector<1x512xf32>
    %78 = vector.broadcast %76 : vector<8x1xf32> to vector<8x512xf32>
    %79 = vector.broadcast %77 : vector<1x512xf32> to vector<8x512xf32>
    %80 = arith.mulf %78, %79 : vector<8x512xf32>
    %81 = arith.addf %75, %80 : vector<8x512xf32>
    %82 = vector.extract_strided_slice %6 {offsets = [0, 1], sizes = [8, 1], strides = [1, 1]} : vector<8x4xf32> to vector<8x1xf32>
    %83 = vector.extract_strided_slice %74 {offsets = [1, 0], sizes = [1, 512], strides = [1, 1]} : vector<4x512xf32> to vector<1x512xf32>
    %84 = vector.broadcast %82 : vector<8x1xf32> to vector<8x512xf32>
    %85 = vector.broadcast %83 : vector<1x512xf32> to vector<8x512xf32>
    %86 = arith.mulf %84, %85 : vector<8x512xf32>
    %87 = arith.addf %81, %86 : vector<8x512xf32>
    %88 = vector.extract_strided_slice %6 {offsets = [0, 2], sizes = [8, 1], strides = [1, 1]} : vector<8x4xf32> to vector<8x1xf32>
    %89 = vector.extract_strided_slice %74 {offsets = [2, 0], sizes = [1, 512], strides = [1, 1]} : vector<4x512xf32> to vector<1x512xf32>
    %90 = vector.broadcast %88 : vector<8x1xf32> to vector<8x512xf32>
    %91 = vector.broadcast %89 : vector<1x512xf32> to vector<8x512xf32>
    %92 = arith.mulf %90, %91 : vector<8x512xf32>
    %93 = arith.addf %87, %92 : vector<8x512xf32>
    %94 = vector.extract_strided_slice %6 {offsets = [0, 3], sizes = [8, 1], strides = [1, 1]} : vector<8x4xf32> to vector<8x1xf32>
    %95 = vector.extract_strided_slice %74 {offsets = [3, 0], sizes = [1, 512], strides = [1, 1]} : vector<4x512xf32> to vector<1x512xf32>
    %96 = vector.broadcast %94 : vector<8x1xf32> to vector<8x512xf32>
    %97 = vector.broadcast %95 : vector<1x512xf32> to vector<8x512xf32>
    %98 = arith.mulf %96, %97 : vector<8x512xf32>
    %99 = arith.addf %93, %98 : vector<8x512xf32>
    %100 = vector.broadcast %7 : vector<8x1xf32> to vector<8x512xf32>
    %101 = arith.addf %99, %100 : vector<8x512xf32>
    %cst_11 = arith.constant 0.000000e+00 : f32
    %102 = vector.broadcast %cst_11 : f32 to vector<8x512xf32>
    %103 = arith.maximumf %101, %102 : vector<8x512xf32>
    %c0_12 = arith.constant 0 : index
    %c0_13 = arith.constant 0 : index
    %104 = vector.load %arg6[%c0_12, %c0_13] : memref<8x9xf32, #tpu.memory_space<vmem>>, vector<8x9xf32>
    %c0_14 = arith.constant 0 : index
    %c0_15 = arith.constant 0 : index
    %105 = vector.load %arg7[%c0_14, %c0_15] : memref<8x8xf32, #tpu.memory_space<vmem>>, vector<8x8xf32>
    %c0_16 = arith.constant 0 : index
    %c0_17 = arith.constant 0 : index
    %106 = vector.load %arg8[%c0_16, %c0_17] : memref<8x1xf32, #tpu.memory_space<vmem>>, vector<8x1xf32>
    %107 = vector.extract_strided_slice %104 {offsets = [0, 4], sizes = [8, 1], strides = [1, 1]} : vector<8x9xf32> to vector<8x1xf32>
    %108 = vector.broadcast %107 : vector<8x1xf32> to vector<8x512xf32>
    %109 = arith.mulf %103, %108 : vector<8x512xf32>
    %c17_i32_18 = arith.constant 17 : i32
    %110 = tpu.dynamic_rotate %103 by %c17_i32_18 dim 1 : vector<8x512xf32>, i32 -> vector<8x512xf32>
    %111 = vector.extract_strided_slice %2 {offsets = [0, 0], sizes = [1, 512], strides = [1, 1]} : vector<9x512xf32> to vector<1x512xf32>
    %112 = vector.broadcast %111 : vector<1x512xf32> to vector<8x512xf32>
    %113 = arith.mulf %110, %112 : vector<8x512xf32>
    %114 = vector.extract_strided_slice %104 {offsets = [0, 0], sizes = [8, 1], strides = [1, 1]} : vector<8x9xf32> to vector<8x1xf32>
    %115 = vector.broadcast %114 : vector<8x1xf32> to vector<8x512xf32>
    %116 = arith.mulf %113, %115 : vector<8x512xf32>
    %117 = arith.addf %109, %116 : vector<8x512xf32>
    %c16_i32_19 = arith.constant 16 : i32
    %118 = tpu.dynamic_rotate %103 by %c16_i32_19 dim 1 : vector<8x512xf32>, i32 -> vector<8x512xf32>
    %119 = vector.extract_strided_slice %2 {offsets = [1, 0], sizes = [1, 512], strides = [1, 1]} : vector<9x512xf32> to vector<1x512xf32>
    %120 = vector.broadcast %119 : vector<1x512xf32> to vector<8x512xf32>
    %121 = arith.mulf %118, %120 : vector<8x512xf32>
    %122 = vector.extract_strided_slice %104 {offsets = [0, 1], sizes = [8, 1], strides = [1, 1]} : vector<8x9xf32> to vector<8x1xf32>
    %123 = vector.broadcast %122 : vector<8x1xf32> to vector<8x512xf32>
    %124 = arith.mulf %121, %123 : vector<8x512xf32>
    %125 = arith.addf %117, %124 : vector<8x512xf32>
    %c15_i32_20 = arith.constant 15 : i32
    %126 = tpu.dynamic_rotate %103 by %c15_i32_20 dim 1 : vector<8x512xf32>, i32 -> vector<8x512xf32>
    %127 = vector.extract_strided_slice %2 {offsets = [2, 0], sizes = [1, 512], strides = [1, 1]} : vector<9x512xf32> to vector<1x512xf32>
    %128 = vector.broadcast %127 : vector<1x512xf32> to vector<8x512xf32>
    %129 = arith.mulf %126, %128 : vector<8x512xf32>
    %130 = vector.extract_strided_slice %104 {offsets = [0, 2], sizes = [8, 1], strides = [1, 1]} : vector<8x9xf32> to vector<8x1xf32>
    %131 = vector.broadcast %130 : vector<8x1xf32> to vector<8x512xf32>
    %132 = arith.mulf %129, %131 : vector<8x512xf32>
    %133 = arith.addf %125, %132 : vector<8x512xf32>
    %c1_i32_21 = arith.constant 1 : i32
    %134 = tpu.dynamic_rotate %103 by %c1_i32_21 dim 1 : vector<8x512xf32>, i32 -> vector<8x512xf32>
    %135 = vector.extract_strided_slice %2 {offsets = [3, 0], sizes = [1, 512], strides = [1, 1]} : vector<9x512xf32> to vector<1x512xf32>
    %136 = vector.broadcast %135 : vector<1x512xf32> to vector<8x512xf32>
    %137 = arith.mulf %134, %136 : vector<8x512xf32>
    %138 = vector.extract_strided_slice %104 {offsets = [0, 3], sizes = [8, 1], strides = [1, 1]} : vector<8x9xf32> to vector<8x1xf32>
    %139 = vector.broadcast %138 : vector<8x1xf32> to vector<8x512xf32>
    %140 = arith.mulf %137, %139 : vector<8x512xf32>
    %141 = arith.addf %133, %140 : vector<8x512xf32>
    %c511_i32_22 = arith.constant 511 : i32
    %142 = tpu.dynamic_rotate %103 by %c511_i32_22 dim 1 : vector<8x512xf32>, i32 -> vector<8x512xf32>
    %143 = vector.extract_strided_slice %2 {offsets = [5, 0], sizes = [1, 512], strides = [1, 1]} : vector<9x512xf32> to vector<1x512xf32>
    %144 = vector.broadcast %143 : vector<1x512xf32> to vector<8x512xf32>
    %145 = arith.mulf %142, %144 : vector<8x512xf32>
    %146 = vector.extract_strided_slice %104 {offsets = [0, 5], sizes = [8, 1], strides = [1, 1]} : vector<8x9xf32> to vector<8x1xf32>
    %147 = vector.broadcast %146 : vector<8x1xf32> to vector<8x512xf32>
    %148 = arith.mulf %145, %147 : vector<8x512xf32>
    %149 = arith.addf %141, %148 : vector<8x512xf32>
    %c497_i32_23 = arith.constant 497 : i32
    %150 = tpu.dynamic_rotate %103 by %c497_i32_23 dim 1 : vector<8x512xf32>, i32 -> vector<8x512xf32>
    %151 = vector.extract_strided_slice %2 {offsets = [6, 0], sizes = [1, 512], strides = [1, 1]} : vector<9x512xf32> to vector<1x512xf32>
    %152 = vector.broadcast %151 : vector<1x512xf32> to vector<8x512xf32>
    %153 = arith.mulf %150, %152 : vector<8x512xf32>
    %154 = vector.extract_strided_slice %104 {offsets = [0, 6], sizes = [8, 1], strides = [1, 1]} : vector<8x9xf32> to vector<8x1xf32>
    %155 = vector.broadcast %154 : vector<8x1xf32> to vector<8x512xf32>
    %156 = arith.mulf %153, %155 : vector<8x512xf32>
    %157 = arith.addf %149, %156 : vector<8x512xf32>
    %c496_i32_24 = arith.constant 496 : i32
    %158 = tpu.dynamic_rotate %103 by %c496_i32_24 dim 1 : vector<8x512xf32>, i32 -> vector<8x512xf32>
    %159 = vector.extract_strided_slice %2 {offsets = [7, 0], sizes = [1, 512], strides = [1, 1]} : vector<9x512xf32> to vector<1x512xf32>
    %160 = vector.broadcast %159 : vector<1x512xf32> to vector<8x512xf32>
    %161 = arith.mulf %158, %160 : vector<8x512xf32>
    %162 = vector.extract_strided_slice %104 {offsets = [0, 7], sizes = [8, 1], strides = [1, 1]} : vector<8x9xf32> to vector<8x1xf32>
    %163 = vector.broadcast %162 : vector<8x1xf32> to vector<8x512xf32>
    %164 = arith.mulf %161, %163 : vector<8x512xf32>
    %165 = arith.addf %157, %164 : vector<8x512xf32>
    %c495_i32_25 = arith.constant 495 : i32
    %166 = tpu.dynamic_rotate %103 by %c495_i32_25 dim 1 : vector<8x512xf32>, i32 -> vector<8x512xf32>
    %167 = vector.extract_strided_slice %2 {offsets = [8, 0], sizes = [1, 512], strides = [1, 1]} : vector<9x512xf32> to vector<1x512xf32>
    %168 = vector.broadcast %167 : vector<1x512xf32> to vector<8x512xf32>
    %169 = arith.mulf %166, %168 : vector<8x512xf32>
    %170 = vector.extract_strided_slice %104 {offsets = [0, 8], sizes = [8, 1], strides = [1, 1]} : vector<8x9xf32> to vector<8x1xf32>
    %171 = vector.broadcast %170 : vector<8x1xf32> to vector<8x512xf32>
    %172 = arith.mulf %169, %171 : vector<8x512xf32>
    %173 = arith.addf %165, %172 : vector<8x512xf32>
    %cst_26 = arith.constant dense<0.000000e+00> : vector<8x512xf32>
    %174 = tpu.matmul %105, %173, %cst_26 {dimension_numbers = #tpu.dot_dimension_numbers<[1], [0], [0], [1], [0, 0, 1, 1], [], []>} : vector<8x8xf32>, vector<8x512xf32>, vector<8x512xf32> -> vector<8x512xf32>
    %175 = vector.broadcast %106 : vector<8x1xf32> to vector<8x512xf32>
    %176 = arith.addf %174, %175 : vector<8x512xf32>
    %c0_27 = arith.constant 0 : index
    %c0_28 = arith.constant 0 : index
    %177 = vector.load %arg11[%c0_27, %c0_28] : memref<9x512xf32, #tpu.memory_space<vmem>>, vector<9x512xf32>
    %c0_29 = arith.constant 0 : index
    %c0_30 = arith.constant 0 : index
    %178 = vector.load %arg12[%c0_29, %c0_30] : memref<512x128xf32, #tpu.memory_space<vmem>>, vector<512x128xf32>
    %c17_i32_31 = arith.constant 17 : i32
    %179 = tpu.dynamic_rotate %176 by %c17_i32_31 dim 1 : vector<8x512xf32>, i32 -> vector<8x512xf32>
    %180 = vector.extract_strided_slice %2 {offsets = [0, 0], sizes = [1, 512], strides = [1, 1]} : vector<9x512xf32> to vector<1x512xf32>
    %181 = vector.broadcast %180 : vector<1x512xf32> to vector<8x512xf32>
    %182 = arith.mulf %179, %181 : vector<8x512xf32>
    %183 = vector.extract_strided_slice %177 {offsets = [0, 0], sizes = [1, 512], strides = [1, 1]} : vector<9x512xf32> to vector<1x512xf32>
    %184 = vector.broadcast %183 : vector<1x512xf32> to vector<8x512xf32>
    %185 = arith.addf %182, %184 : vector<8x512xf32>
    %186 = arith.maximumf %176, %185 : vector<8x512xf32>
    %c16_i32_32 = arith.constant 16 : i32
    %187 = tpu.dynamic_rotate %176 by %c16_i32_32 dim 1 : vector<8x512xf32>, i32 -> vector<8x512xf32>
    %188 = vector.extract_strided_slice %2 {offsets = [1, 0], sizes = [1, 512], strides = [1, 1]} : vector<9x512xf32> to vector<1x512xf32>
    %189 = vector.broadcast %188 : vector<1x512xf32> to vector<8x512xf32>
    %190 = arith.mulf %187, %189 : vector<8x512xf32>
    %191 = vector.extract_strided_slice %177 {offsets = [1, 0], sizes = [1, 512], strides = [1, 1]} : vector<9x512xf32> to vector<1x512xf32>
    %192 = vector.broadcast %191 : vector<1x512xf32> to vector<8x512xf32>
    %193 = arith.addf %190, %192 : vector<8x512xf32>
    %194 = arith.maximumf %186, %193 : vector<8x512xf32>
    %c15_i32_33 = arith.constant 15 : i32
    %195 = tpu.dynamic_rotate %176 by %c15_i32_33 dim 1 : vector<8x512xf32>, i32 -> vector<8x512xf32>
    %196 = vector.extract_strided_slice %2 {offsets = [2, 0], sizes = [1, 512], strides = [1, 1]} : vector<9x512xf32> to vector<1x512xf32>
    %197 = vector.broadcast %196 : vector<1x512xf32> to vector<8x512xf32>
    %198 = arith.mulf %195, %197 : vector<8x512xf32>
    %199 = vector.extract_strided_slice %177 {offsets = [2, 0], sizes = [1, 512], strides = [1, 1]} : vector<9x512xf32> to vector<1x512xf32>
    %200 = vector.broadcast %199 : vector<1x512xf32> to vector<8x512xf32>
    %201 = arith.addf %198, %200 : vector<8x512xf32>
    %202 = arith.maximumf %194, %201 : vector<8x512xf32>
    %c1_i32_34 = arith.constant 1 : i32
    %203 = tpu.dynamic_rotate %176 by %c1_i32_34 dim 1 : vector<8x512xf32>, i32 -> vector<8x512xf32>
    %204 = vector.extract_strided_slice %2 {offsets = [3, 0], sizes = [1, 512], strides = [1, 1]} : vector<9x512xf32> to vector<1x512xf32>
    %205 = vector.broadcast %204 : vector<1x512xf32> to vector<8x512xf32>
    %206 = arith.mulf %203, %205 : vector<8x512xf32>
    %207 = vector.extract_strided_slice %177 {offsets = [3, 0], sizes = [1, 512], strides = [1, 1]} : vector<9x512xf32> to vector<1x512xf32>
    %208 = vector.broadcast %207 : vector<1x512xf32> to vector<8x512xf32>
    %209 = arith.addf %206, %208 : vector<8x512xf32>
    %210 = arith.maximumf %202, %209 : vector<8x512xf32>
    %c511_i32_35 = arith.constant 511 : i32
    %211 = tpu.dynamic_rotate %176 by %c511_i32_35 dim 1 : vector<8x512xf32>, i32 -> vector<8x512xf32>
    %212 = vector.extract_strided_slice %2 {offsets = [5, 0], sizes = [1, 512], strides = [1, 1]} : vector<9x512xf32> to vector<1x512xf32>
    %213 = vector.broadcast %212 : vector<1x512xf32> to vector<8x512xf32>
    %214 = arith.mulf %211, %213 : vector<8x512xf32>
    %215 = vector.extract_strided_slice %177 {offsets = [5, 0], sizes = [1, 512], strides = [1, 1]} : vector<9x512xf32> to vector<1x512xf32>
    %216 = vector.broadcast %215 : vector<1x512xf32> to vector<8x512xf32>
    %217 = arith.addf %214, %216 : vector<8x512xf32>
    %218 = arith.maximumf %210, %217 : vector<8x512xf32>
    %c497_i32_36 = arith.constant 497 : i32
    %219 = tpu.dynamic_rotate %176 by %c497_i32_36 dim 1 : vector<8x512xf32>, i32 -> vector<8x512xf32>
    %220 = vector.extract_strided_slice %2 {offsets = [6, 0], sizes = [1, 512], strides = [1, 1]} : vector<9x512xf32> to vector<1x512xf32>
    %221 = vector.broadcast %220 : vector<1x512xf32> to vector<8x512xf32>
    %222 = arith.mulf %219, %221 : vector<8x512xf32>
    %223 = vector.extract_strided_slice %177 {offsets = [6, 0], sizes = [1, 512], strides = [1, 1]} : vector<9x512xf32> to vector<1x512xf32>
    %224 = vector.broadcast %223 : vector<1x512xf32> to vector<8x512xf32>
    %225 = arith.addf %222, %224 : vector<8x512xf32>
    %226 = arith.maximumf %218, %225 : vector<8x512xf32>
    %c496_i32_37 = arith.constant 496 : i32
    %227 = tpu.dynamic_rotate %176 by %c496_i32_37 dim 1 : vector<8x512xf32>, i32 -> vector<8x512xf32>
    %228 = vector.extract_strided_slice %2 {offsets = [7, 0], sizes = [1, 512], strides = [1, 1]} : vector<9x512xf32> to vector<1x512xf32>
    %229 = vector.broadcast %228 : vector<1x512xf32> to vector<8x512xf32>
    %230 = arith.mulf %227, %229 : vector<8x512xf32>
    %231 = vector.extract_strided_slice %177 {offsets = [7, 0], sizes = [1, 512], strides = [1, 1]} : vector<9x512xf32> to vector<1x512xf32>
    %232 = vector.broadcast %231 : vector<1x512xf32> to vector<8x512xf32>
    %233 = arith.addf %230, %232 : vector<8x512xf32>
    %234 = arith.maximumf %226, %233 : vector<8x512xf32>
    %c495_i32_38 = arith.constant 495 : i32
    %235 = tpu.dynamic_rotate %176 by %c495_i32_38 dim 1 : vector<8x512xf32>, i32 -> vector<8x512xf32>
    %236 = vector.extract_strided_slice %2 {offsets = [8, 0], sizes = [1, 512], strides = [1, 1]} : vector<9x512xf32> to vector<1x512xf32>
    %237 = vector.broadcast %236 : vector<1x512xf32> to vector<8x512xf32>
    %238 = arith.mulf %235, %237 : vector<8x512xf32>
    %239 = vector.extract_strided_slice %177 {offsets = [8, 0], sizes = [1, 512], strides = [1, 1]} : vector<9x512xf32> to vector<1x512xf32>
    %240 = vector.broadcast %239 : vector<1x512xf32> to vector<8x512xf32>
    %241 = arith.addf %238, %240 : vector<8x512xf32>
    %242 = arith.maximumf %234, %241 : vector<8x512xf32>
    %cst_39 = arith.constant dense<0.000000e+00> : vector<8x128xf32>
    %243 = tpu.matmul %242, %178, %cst_39 {dimension_numbers = #tpu.dot_dimension_numbers<[1], [0], [0], [1], [0, 0, 1, 1], [], []>} : vector<8x512xf32>, vector<512x128xf32>, vector<8x128xf32> -> vector<8x128xf32>
    %cst_40 = arith.constant 0.000000e+00 : f32
    %244 = vector.broadcast %cst_40 : f32 to vector<4x512xf32>
    %245 = arith.maximumf %1, %244 : vector<4x512xf32>
    %cst_41 = arith.constant dense<0.000000e+00> : vector<4x128xf32>
    %246 = tpu.matmul %245, %178, %cst_41 {dimension_numbers = #tpu.dot_dimension_numbers<[1], [0], [0], [1], [0, 0, 1, 1], [], []>} : vector<4x512xf32>, vector<512x128xf32>, vector<4x128xf32> -> vector<4x128xf32>
    %c0_42 = arith.constant 0 : index
    %c0_43 = arith.constant 0 : index
    %247 = vector.load %arg9[%c0_42, %c0_43] : memref<8x4xf32, #tpu.memory_space<vmem>>, vector<8x4xf32>
    %cst_44 = arith.constant 0.000000e+00 : f32
    %248 = vector.broadcast %cst_44 : f32 to vector<8x128xf32>
    %249 = vector.extract_strided_slice %247 {offsets = [0, 0], sizes = [8, 1], strides = [1, 1]} : vector<8x4xf32> to vector<8x1xf32>
    %250 = vector.extract_strided_slice %246 {offsets = [0, 0], sizes = [1, 128], strides = [1, 1]} : vector<4x128xf32> to vector<1x128xf32>
    %251 = vector.broadcast %249 : vector<8x1xf32> to vector<8x128xf32>
    %252 = vector.broadcast %250 : vector<1x128xf32> to vector<8x128xf32>
    %253 = arith.mulf %251, %252 : vector<8x128xf32>
    %254 = arith.addf %248, %253 : vector<8x128xf32>
    %255 = vector.extract_strided_slice %247 {offsets = [0, 1], sizes = [8, 1], strides = [1, 1]} : vector<8x4xf32> to vector<8x1xf32>
    %256 = vector.extract_strided_slice %246 {offsets = [1, 0], sizes = [1, 128], strides = [1, 1]} : vector<4x128xf32> to vector<1x128xf32>
    %257 = vector.broadcast %255 : vector<8x1xf32> to vector<8x128xf32>
    %258 = vector.broadcast %256 : vector<1x128xf32> to vector<8x128xf32>
    %259 = arith.mulf %257, %258 : vector<8x128xf32>
    %260 = arith.addf %254, %259 : vector<8x128xf32>
    %261 = vector.extract_strided_slice %247 {offsets = [0, 2], sizes = [8, 1], strides = [1, 1]} : vector<8x4xf32> to vector<8x1xf32>
    %262 = vector.extract_strided_slice %246 {offsets = [2, 0], sizes = [1, 128], strides = [1, 1]} : vector<4x128xf32> to vector<1x128xf32>
    %263 = vector.broadcast %261 : vector<8x1xf32> to vector<8x128xf32>
    %264 = vector.broadcast %262 : vector<1x128xf32> to vector<8x128xf32>
    %265 = arith.mulf %263, %264 : vector<8x128xf32>
    %266 = arith.addf %260, %265 : vector<8x128xf32>
    %267 = vector.extract_strided_slice %247 {offsets = [0, 3], sizes = [8, 1], strides = [1, 1]} : vector<8x4xf32> to vector<8x1xf32>
    %268 = vector.extract_strided_slice %246 {offsets = [3, 0], sizes = [1, 128], strides = [1, 1]} : vector<4x128xf32> to vector<1x128xf32>
    %269 = vector.broadcast %267 : vector<8x1xf32> to vector<8x128xf32>
    %270 = vector.broadcast %268 : vector<1x128xf32> to vector<8x128xf32>
    %271 = arith.mulf %269, %270 : vector<8x128xf32>
    %272 = arith.addf %266, %271 : vector<8x128xf32>
    %273 = arith.addf %243, %272 : vector<8x128xf32>
    %c0_45 = arith.constant 0 : index
    %c0_46 = arith.constant 0 : index
    %274 = vector.load %arg10[%c0_45, %c0_46] : memref<8x1xf32, #tpu.memory_space<vmem>>, vector<8x1xf32>
    %275 = vector.broadcast %274 : vector<8x1xf32> to vector<8x128xf32>
    %276 = arith.addf %273, %275 : vector<8x128xf32>
    %c0_47 = arith.constant 0 : index
    %c0_48 = arith.constant 0 : index
    %c0_49 = arith.constant 0 : index
    %277 = vector.load %arg13[%c0_47, %c0_48, %c0_49] : memref<1x8x128xf32, #tpu.memory_space<vmem>>, vector<1x8x128xf32>
    %278 = vector.shape_cast %277 : vector<1x8x128xf32> to vector<8x128xf32>
    %279 = vector.shape_cast %276 : vector<8x128xf32> to vector<1x8x128xf32>
    tpu.vector_store %arg13[%c0_47, %c0_48, %c0_49], %279 {strides = array<i32>} : memref<1x8x128xf32, #tpu.memory_space<vmem>>, vector<1x8x128xf32>,
    return
  }
  func.func @transform_0(%arg0: i32) -> (i32, i32, i32) {
    %c0_i32 = arith.constant 0 : i32
    %c0_i32_0 = arith.constant 0 : i32
    %c0_i32_1 = arith.constant 0 : i32
    return %arg0, %c0_i32, %c0_i32_0 : i32, i32, i32
  }
  func.func @transform_1(%arg0: i32) -> (i32, i32) {
    %c0_i32 = arith.constant 0 : i32
    %c0_i32_0 = arith.constant 0 : i32
    %c0_i32_1 = arith.constant 0 : i32
    return %c0_i32, %c0_i32_0 : i32, i32
  }
  func.func @transform_2(%arg0: i32) -> (i32, i32) {
    %c0_i32 = arith.constant 0 : i32
    %c0_i32_0 = arith.constant 0 : i32
    %c0_i32_1 = arith.constant 0 : i32
    return %c0_i32, %c0_i32_0 : i32, i32
  }
  func.func @transform_3(%arg0: i32) -> (i32, i32) {
    %c0_i32 = arith.constant 0 : i32
    %c0_i32_0 = arith.constant 0 : i32
    %c0_i32_1 = arith.constant 0 : i32
    return %c0_i32, %c0_i32_0 : i32, i32
  }
  func.func @transform_4(%arg0: i32) -> (i32, i32) {
    %c0_i32 = arith.constant 0 : i32
    %c0_i32_0 = arith.constant 0 : i32
    %c0_i32_1 = arith.constant 0 : i32
    return %c0_i32, %c0_i32_0 : i32, i32
  }
  func.func @transform_5(%arg0: i32) -> (i32, i32) {
    %c0_i32 = arith.constant 0 : i32
    %c0_i32_0 = arith.constant 0 : i32
    %c0_i32_1 = arith.constant 0 : i32
    return %c0_i32, %c0_i32_0 : i32, i32
  }
  func.func @transform_6(%arg0: i32) -> (i32, i32) {
    %c0_i32 = arith.constant 0 : i32
    %c0_i32_0 = arith.constant 0 : i32
    %c0_i32_1 = arith.constant 0 : i32
    return %c0_i32, %c0_i32_0 : i32, i32
  }
  func.func @transform_7(%arg0: i32) -> (i32, i32) {
    %c0_i32 = arith.constant 0 : i32
    %c0_i32_0 = arith.constant 0 : i32
    %c0_i32_1 = arith.constant 0 : i32
    return %c0_i32, %c0_i32_0 : i32, i32
  }
  func.func @transform_8(%arg0: i32) -> (i32, i32) {
    %c0_i32 = arith.constant 0 : i32
    %c0_i32_0 = arith.constant 0 : i32
    %c0_i32_1 = arith.constant 0 : i32
    return %c0_i32, %c0_i32_0 : i32, i32
  }
  func.func @transform_9(%arg0: i32) -> (i32, i32) {
    %c0_i32 = arith.constant 0 : i32
    %c0_i32_0 = arith.constant 0 : i32
    %c0_i32_1 = arith.constant 0 : i32
    return %c0_i32, %c0_i32_0 : i32, i32
  }
  func.func @transform_10(%arg0: i32) -> (i32, i32) {
    %c0_i32 = arith.constant 0 : i32
    %c0_i32_0 = arith.constant 0 : i32
    %c0_i32_1 = arith.constant 0 : i32
    return %c0_i32, %c0_i32_0 : i32, i32
  }
  func.func @transform_11(%arg0: i32) -> (i32, i32) {
    %c0_i32 = arith.constant 0 : i32
    %c0_i32_0 = arith.constant 0 : i32
    %c0_i32_1 = arith.constant 0 : i32
    return %c0_i32, %c0_i32_0 : i32, i32
  }
  func.func @transform_12(%arg0: i32) -> (i32, i32, i32) {
    %c0_i32 = arith.constant 0 : i32
    %c0_i32_0 = arith.constant 0 : i32
    %c0_i32_1 = arith.constant 0 : i32
    return %arg0, %c0_i32, %c0_i32_0 : i32, i32, i32
  }
}

</mosaic_0001>

<llo_original>
// kernel: tpu_custom_call.1
$region0: #{tpu_custom_call.1}
  #allocation0 [shape = 'u32[]', space=smem, size = 0x4, offset = 0x4, fixed_abs, tag = 'smem constant byte address 0x4 - core index']
  #allocation1 [shape = 'u32[144,128]{1,0:T(1,128)}', space=vmem, size = 0x12000, scoped, tag = 'internal scratch']
  %s0 = inlined_call_operand.hbm [shape: f32[2,4,512], index: 0, kind: input, shape index: {}]
  %s1 = inlined_call_operand.hbm [shape: f32[9,512], index: 1, kind: input, shape index: {}]
  %s2 = inlined_call_operand.vmem [shape: f32[4,9], index: 2, kind: input, shape index: {}]
  %s3 = inlined_call_operand.vmem [shape: f32[8,4], index: 3, kind: input, shape index: {}]
  %s4 = inlined_call_operand.vmem [shape: f32[8,1], index: 4, kind: input, shape index: {}]
  %s5 = inlined_call_operand.vmem [shape: f32[8,9], index: 5, kind: input, shape index: {}]
  %s6 = inlined_call_operand.vmem [shape: f32[8,8], index: 6, kind: input, shape index: {}]
  %s7 = inlined_call_operand.vmem [shape: f32[8,1], index: 7, kind: input, shape index: {}]
  %s8 = inlined_call_operand.vmem [shape: f32[8,4], index: 8, kind: input, shape index: {}]
  %s9 = inlined_call_operand.vmem [shape: f32[8,1], index: 9, kind: input, shape index: {}]
  %s10 = inlined_call_operand.vmem [shape: f32[9,512], index: 10, kind: input, shape index: {}]
  %s11 = inlined_call_operand.hbm [shape: f32[512,128], index: 11, kind: input, shape index: {}]
  %s12 = inlined_call_operand.hbm [shape: f32[2,8,128], index: 12, kind: output, shape index: {}]
  %s13 = sld [smem:[#allocation0]]
  $region93: #{tpu_custom_call.1} parent=0
    _
  %s15 = ssub.s32 1, %s13
  %s16 = scalar_select 0, %s15, %s13
  $region1: #{tpu_custom_call.1} parent=0
    #allocation2 [shape = 'u8[16384]{0}', space=vmem, size = 0x4000, scoped, tag = 'input window, operand 0']
    #allocation3 [shape = 's32[2]{0}', space=sflag, size = 0x8, scoped, tag = 'scoped memory for tpu_custom_call.1']
    #allocation4 [shape = 's32[2]{0}', space=sflag, size = 0x8, scoped, tag = 'scoped memory for tpu_custom_call.1']
    #allocation5 [shape = 'u8[32768]{0}', space=vmem, size = 0x8000, scoped, tag = 'input window, operand 1, single buffered']
    #allocation6 [shape = 's32[1]{0}', space=sflag, size = 0x4, scoped, tag = 'scoped memory for tpu_custom_call.1']
    #allocation7 [shape = 'u8[262144]{0}', space=vmem, size = 0x40000, scoped, tag = 'input window, operand 11, single buffered']
    #allocation8 [shape = 'u8[8192]{0}', space=vmem, size = 0x2000, scoped, tag = 'output window, operand 0']
    %17 = vsyncpa [#allocation3], 0
    %s18 = scalar_lea.sflag [#allocation3], 1
    %19 = vsyncpa %s18, 0
    %20 = vsyncpa [#allocation6], 0
    %21 = vsyncpa [#allocation4], 0
    %s22 = scalar_lea.sflag [#allocation4], 1
    %23 = vsyncpa %s22, 0
    loop: start=0, step=1, limit=4
    $region2: #{tpu_custom_call.1} parent=1 // loop_pre_header
      _
    $region3: #{tpu_custom_call.1} parent=1 // loop_header
      %s25 = sphi 0, %s29
      %p26 = scmp.ge.s32.totalorder %s25, 4
      %s35 = sphi 0, %s37
      %s38 = sphi 0, %s35
      %s39 = sphi 0, %s38
      %s55 = sphi 0, %s39
      %s59 = sphi 0, %s59
      %s61 = sphi 0, %s59
      %s62 = sphi 0, %s61
      %s76 = sphi 0, %s62
      %s80 = sphi 0, %s80
      %s82 = sphi 0, %s80
      %s83 = sphi 0, %s82
      %s97 = sphi 0, %s83
      %s101 = sphi 0, %s101
      %s103 = sphi 0, %s101
      %s104 = sphi 0, %s103
      %s118 = sphi 0, %s104
      %s122 = sphi 0, %s122
      %s124 = sphi 0, %s122
      %s125 = sphi 0, %s124
      %s139 = sphi 0, %s125
      %s143 = sphi 0, %s143
      %s145 = sphi 0, %s143
      %s146 = sphi 0, %s145
      %s160 = sphi 0, %s146
      %s164 = sphi 0, %s164
      %s166 = sphi 0, %s164
      %s167 = sphi 0, %s166
      %s181 = sphi 0, %s167
      %s185 = sphi 0, %s185
      %s187 = sphi 0, %s185
      %s188 = sphi 0, %s187
      %s202 = sphi 0, %s188
      %s206 = sphi 0, %s206
      %s208 = sphi 0, %s206
      %s209 = sphi 0, %s208
      %s223 = sphi 0, %s209
      %s227 = sphi 0, %s227
      %s229 = sphi 0, %s227
      %s230 = sphi 0, %s229
      %s244 = sphi 0, %s230
      %s248 = sphi 0, %s248
      %s250 = sphi 0, %s248
      %s251 = sphi 0, %s250
      %s265 = sphi 0, %s251
      %s269 = sphi 0, %s269
      %s271 = sphi 0, %s269
      %s272 = sphi 0, %s271
      %s286 = sphi 0, %s272
      %s292 = sphi 0, %s294
      %s295 = sphi 0, %s292
      %s296 = sphi 0, %s295
      %s312 = sphi 0, %s296
    $region4: #{tpu_custom_call.1} parent=1 // loop_header_branch
      %28 = sbr.rel (%p26) target = $region8
    $region5: #{tpu_custom_call.1} parent=1 // loop_body
      %s30 = ssub.s32 %s25, 1
      %s31 = ssub.s32 %s25, 2
      %s32 = sadd.s32 %s25, 1
      %s33 = ssub.s32 %s25, %s32
      %p34 = scmp.eq.s32.totalorder %s33, 0
      %s36 = sadd.s32 %s35, 1
      %s37 = scalar_select %p34, %s35, %s36
      %p40 = pneg %p34
      %p41 = scmp.eq.s32.totalorder %s25, 1
      %p42 = por %p40, %p41
      %p43 = scmp.ne.s32.totalorder %s35, %s38
      %p44 = scmp.eq.s32.totalorder %s25, 0
      %p45 = por %p43, %p44
      %p46 = scmp.ne.s32.totalorder %s35, %s38
      %p47 = scmp.eq.s32.totalorder %s30, 1
      %p48 = por %p46, %p47
      %p49 = scmp.ne.s32.totalorder %s38, %s39
      %p50 = scmp.eq.s32.totalorder %s30, 0
      %p51 = por %p49, %p50
      %p52 = scmp.ne.s32.totalorder %s38, %s39
      %p53 = scmp.eq.s32.totalorder %s31, 1
      %p54 = por %p52, %p53
      %p56 = scmp.ne.s32.totalorder %s39, %s55
      %p57 = scmp.eq.s32.totalorder %s31, 0
      %p58 = por %p56, %p57
      %s60 = sadd.s32 %s59, 1
      %p63 = scmp.eq.s32.totalorder %s25, 1
      %p64 = scmp.ne.s32.totalorder %s59, %s61
      %p65 = scmp.eq.s32.totalorder %s25, 0
      %p66 = por %p64, %p65
      %p67 = scmp.ne.s32.totalorder %s59, %s61
      %p68 = scmp.eq.s32.totalorder %s30, 1
      %p69 = por %p67, %p68
      %p70 = scmp.ne.s32.totalorder %s61, %s62
      %p71 = scmp.eq.s32.totalorder %s30, 0
      %p72 = por %p70, %p71
      %p73 = scmp.ne.s32.totalorder %s61, %s62
      %p74 = scmp.eq.s32.totalorder %s31, 1
      %p75 = por %p73, %p74
      %p77 = scmp.ne.s32.totalorder %s62, %s76
      %p78 = scmp.eq.s32.totalorder %s31, 0
      %p79 = por %p77, %p78
      %s81 = sadd.s32 %s80, 1
      %p84 = scmp.eq.s32.totalorder %s25, 1
      %p85 = scmp.ne.s32.totalorder %s80, %s82
      %p86 = scmp.eq.s32.totalorder %s25, 0
      %p87 = por %p85, %p86
      %p88 = scmp.ne.s32.totalorder %s80, %s82
      %p89 = scmp.eq.s32.totalorder %s30, 1
      %p90 = por %p88, %p89
      %p91 = scmp.ne.s32.totalorder %s82, %s83
      %p92 = scmp.eq.s32.totalorder %s30, 0
      %p93 = por %p91, %p92
      %p94 = scmp.ne.s32.totalorder %s82, %s83
      %p95 = scmp.eq.s32.totalorder %s31, 1
      %p96 = por %p94, %p95
      %p98 = scmp.ne.s32.totalorder %s83, %s97
      %p99 = scmp.eq.s32.totalorder %s31, 0
      %p100 = por %p98, %p99
      %s102 = sadd.s32 %s101, 1
      %p105 = scmp.eq.s32.totalorder %s25, 1
      %p106 = scmp.ne.s32.totalorder %s101, %s103
      %p107 = scmp.eq.s32.totalorder %s25, 0
      %p108 = por %p106, %p107
      %p109 = scmp.ne.s32.totalorder %s101, %s103
      %p110 = scmp.eq.s32.totalorder %s30, 1
      %p111 = por %p109, %p110
      %p112 = scmp.ne.s32.totalorder %s103, %s104
      %p113 = scmp.eq.s32.totalorder %s30, 0
      %p114 = por %p112, %p113
      %p115 = scmp.ne.s32.totalorder %s103, %s104
      %p116 = scmp.eq.s32.totalorder %s31, 1
      %p117 = por %p115, %p116
      %p119 = scmp.ne.s32.totalorder %s104, %s118
      %p120 = scmp.eq.s32.totalorder %s31, 0
      %p121 = por %p119, %p120
      %s123 = sadd.s32 %s122, 1
      %p126 = scmp.eq.s32.totalorder %s25, 1
      %p127 = scmp.ne.s32.totalorder %s122, %s124
      %p128 = scmp.eq.s32.totalorder %s25, 0
      %p129 = por %p127, %p128
      %p130 = scmp.ne.s32.totalorder %s122, %s124
      %p131 = scmp.eq.s32.totalorder %s30, 1
      %p132 = por %p130, %p131
      %p133 = scmp.ne.s32.totalorder %s124, %s125
      %p134 = scmp.eq.s32.totalorder %s30, 0
      %p135 = por %p133, %p134
      %p136 = scmp.ne.s32.totalorder %s124, %s125
      %p137 = scmp.eq.s32.totalorder %s31, 1
      %p138 = por %p136, %p137
      %p140 = scmp.ne.s32.totalorder %s125, %s139
      %p141 = scmp.eq.s32.totalorder %s31, 0
      %p142 = por %p140, %p141
      %s144 = sadd.s32 %s143, 1
      %p147 = scmp.eq.s32.totalorder %s25, 1
      %p148 = scmp.ne.s32.totalorder %s143, %s145
      %p149 = scmp.eq.s32.totalorder %s25, 0
      %p150 = por %p148, %p149
      %p151 = scmp.ne.s32.totalorder %s143, %s145
      %p152 = scmp.eq.s32.totalorder %s30, 1
      %p153 = por %p151, %p152
      %p154 = scmp.ne.s32.totalorder %s145, %s146
      %p155 = scmp.eq.s32.totalorder %s30, 0
      %p156 = por %p154, %p155
      %p157 = scmp.ne.s32.totalorder %s145, %s146
      %p158 = scmp.eq.s32.totalorder %s31, 1
      %p159 = por %p157, %p158
      %p161 = scmp.ne.s32.totalorder %s146, %s160
      %p162 = scmp.eq.s32.totalorder %s31, 0
      %p163 = por %p161, %p162
      %s165 = sadd.s32 %s164, 1
      %p168 = scmp.eq.s32.totalorder %s25, 1
      %p169 = scmp.ne.s32.totalorder %s164, %s166
      %p170 = scmp.eq.s32.totalorder %s25, 0
      %p171 = por %p169, %p170
      %p172 = scmp.ne.s32.totalorder %s164, %s166
      %p173 = scmp.eq.s32.totalorder %s30, 1
      %p174 = por %p172, %p173
      %p175 = scmp.ne.s32.totalorder %s166, %s167
      %p176 = scmp.eq.s32.totalorder %s30, 0
      %p177 = por %p175, %p176
      %p178 = scmp.ne.s32.totalorder %s166, %s167
      %p179 = scmp.eq.s32.totalorder %s31, 1
      %p180 = por %p178, %p179
      %p182 = scmp.ne.s32.totalorder %s167, %s181
      %p183 = scmp.eq.s32.totalorder %s31, 0
      %p184 = por %p182, %p183
      %s186 = sadd.s32 %s185, 1
      %p189 = scmp.eq.s32.totalorder %s25, 1
      %p190 = scmp.ne.s32.totalorder %s185, %s187
      %p191 = scmp.eq.s32.totalorder %s25, 0
      %p192 = por %p190, %p191
      %p193 = scmp.ne.s32.totalorder %s185, %s187
      %p194 = scmp.eq.s32.totalorder %s30, 1
      %p195 = por %p193, %p194
      %p196 = scmp.ne.s32.totalorder %s187, %s188
      %p197 = scmp.eq.s32.totalorder %s30, 0
      %p198 = por %p196, %p197
      %p199 = scmp.ne.s32.totalorder %s187, %s188
      %p200 = scmp.eq.s32.totalorder %s31, 1
      %p201 = por %p199, %p200
      %p203 = scmp.ne.s32.totalorder %s188, %s202
      %p204 = scmp.eq.s32.totalorder %s31, 0
      %p205 = por %p203, %p204
      %s207 = sadd.s32 %s206, 1
      %p210 = scmp.eq.s32.totalorder %s25, 1
      %p211 = scmp.ne.s32.totalorder %s206, %s208
      %p212 = scmp.eq.s32.totalorder %s25, 0
      %p213 = por %p211, %p212
      %p214 = scmp.ne.s32.totalorder %s206, %s208
      %p215 = scmp.eq.s32.totalorder %s30, 1
      %p216 = por %p214, %p215
      %p217 = scmp.ne.s32.totalorder %s208, %s209
      %p218 = scmp.eq.s32.totalorder %s30, 0
      %p219 = por %p217, %p218
      %p220 = scmp.ne.s32.totalorder %s208, %s209
      %p221 = scmp.eq.s32.totalorder %s31, 1
      %p222 = por %p220, %p221
      %p224 = scmp.ne.s32.totalorder %s209, %s223
      %p225 = scmp.eq.s32.totalorder %s31, 0
      %p226 = por %p224, %p225
      %s228 = sadd.s32 %s227, 1
      %p231 = scmp.eq.s32.totalorder %s25, 1
      %p232 = scmp.ne.s32.totalorder %s227, %s229
      %p233 = scmp.eq.s32.totalorder %s25, 0
      %p234 = por %p232, %p233
      %p235 = scmp.ne.s32.totalorder %s227, %s229
      %p236 = scmp.eq.s32.totalorder %s30, 1
      %p237 = por %p235, %p236
      %p238 = scmp.ne.s32.totalorder %s229, %s230
      %p239 = scmp.eq.s32.totalorder %s30, 0
      %p240 = por %p238, %p239
      %p241 = scmp.ne.s32.totalorder %s229, %s230
      %p242 = scmp.eq.s32.totalorder %s31, 1
      %p243 = por %p241, %p242
      %p245 = scmp.ne.s32.totalorder %s230, %s244
      %p246 = scmp.eq.s32.totalorder %s31, 0
      %p247 = por %p245, %p246
      %s249 = sadd.s32 %s248, 1
      %p252 = scmp.eq.s32.totalorder %s25, 1
      %p253 = scmp.ne.s32.totalorder %s248, %s250
      %p254 = scmp.eq.s32.totalorder %s25, 0
      %p255 = por %p253, %p254
      %p256 = scmp.ne.s32.totalorder %s248, %s250
      %p257 = scmp.eq.s32.totalorder %s30, 1
      %p258 = por %p256, %p257
      %p259 = scmp.ne.s32.totalorder %s250, %s251
      %p260 = scmp.eq.s32.totalorder %s30, 0
      %p261 = por %p259, %p260
      %p262 = scmp.ne.s32.totalorder %s250, %s251
      %p263 = scmp.eq.s32.totalorder %s31, 1
      %p264 = por %p262, %p263
      %p266 = scmp.ne.s32.totalorder %s251, %s265
      %p267 = scmp.eq.s32.totalorder %s31, 0
      %p268 = por %p266, %p267
      %s270 = sadd.s32 %s269, 1
      %p273 = scmp.eq.s32.totalorder %s25, 1
      %p274 = scmp.ne.s32.totalorder %s269, %s271
      %p275 = scmp.eq.s32.totalorder %s25, 0
      %p276 = por %p274, %p275
      %p277 = scmp.ne.s32.totalorder %s269, %s271
      %p278 = scmp.eq.s32.totalorder %s30, 1
      %p279 = por %p277, %p278
      %p280 = scmp.ne.s32.totalorder %s271, %s272
      %p281 = scmp.eq.s32.totalorder %s30, 0
      %p282 = por %p280, %p281
      %p283 = scmp.ne.s32.totalorder %s271, %s272
      %p284 = scmp.eq.s32.totalorder %s31, 1
      %p285 = por %p283, %p284
      %p287 = scmp.ne.s32.totalorder %s272, %s286
      %p288 = scmp.eq.s32.totalorder %s31, 0
      %p289 = por %p287, %p288
      %s290 = ssub.s32 %s25, %s32
      %p291 = scmp.eq.s32.totalorder %s290, 0
      %s293 = sadd.s32 %s292, 1
      %s294 = scalar_select %p291, %s292, %s293
      %p297 = pneg %p291
      %p298 = scmp.eq.s32.totalorder %s25, 1
      %p299 = por %p297, %p298
      %p300 = scmp.ne.s32.totalorder %s292, %s295
      %p301 = scmp.eq.s32.totalorder %s25, 0
      %p302 = por %p300, %p301
      %p303 = scmp.ne.s32.totalorder %s292, %s295
      %p304 = scmp.eq.s32.totalorder %s30, 1
      %p305 = por %p303, %p304
      %p306 = scmp.ne.s32.totalorder %s295, %s296
      %p307 = scmp.eq.s32.totalorder %s30, 0
      %p308 = por %p306, %p307
      %p309 = scmp.ne.s32.totalorder %s295, %s296
      %p310 = scmp.eq.s32.totalorder %s31, 1
      %p311 = por %p309, %p310
      %p313 = scmp.ne.s32.totalorder %s296, %s312
      %p314 = scmp.eq.s32.totalorder %s31, 0
      %p315 = por %p313, %p314
      %p316 = scmp.le.s32.totalorder 1, %s25
      %p317 = scmp.lt.s32.totalorder %s25, 3
      %p318 = pnand %p316, %p317
      %p319 = pneg %p318
      // Predicated region
      $region9: #{tpu_custom_call.1} parent=5 // pred_check
        _
      $region10: #{tpu_custom_call.1} parent=5 // pred_check_branch
        %321 = sbr.rel (%p318) target = $region12
      $region11: #{tpu_custom_call.1} parent=5 // pred_region
        %s322 = ssub.s32 %s25, 1
        // Predicated region
        $region13: #{tpu_custom_call.1} parent=11 // pred_check
          %p323 = pneg %p72
        $region14: #{tpu_custom_call.1} parent=11 // pred_check_branch
          %325 = sbr.rel (%p323) target = $region16
        $region15: #{tpu_custom_call.1} parent=11 // pred_region
          %s327 = ssub.s32 1024, 1024
          %328 = vsyncadd [#allocation6], %s327
          %s329 = sshll.u32 [#allocation5], 4
          %s330 = int_to_ptr.vmem [resolvable:$true] %s329
          %335 = dma.hbm_to_vmem [thread:$0]  %s1, 1024, %s330, [#allocation6], 512, 512, 32
        $region16: #{tpu_custom_call.1} parent=11 // pred_fallthru
          _
        // Predicated region
        $region17: #{tpu_custom_call.1} parent=11 // pred_check
          %p336 = pneg %p93
        $region18: #{tpu_custom_call.1} parent=11 // pred_check_branch
          %338 = sbr.rel (%p336) target = $region20
        $region19: #{tpu_custom_call.1} parent=11 // pred_region
          _
        $region20: #{tpu_custom_call.1} parent=11 // pred_fallthru
          _
        // Predicated region
        $region21: #{tpu_custom_call.1} parent=11 // pred_check
          %p339 = pneg %p114
        $region22: #{tpu_custom_call.1} parent=11 // pred_check_branch
          %341 = sbr.rel (%p339) target = $region24
        $region23: #{tpu_custom_call.1} parent=11 // pred_region
          _
        $region24: #{tpu_custom_call.1} parent=11 // pred_fallthru
          _
        // Predicated region
        $region25: #{tpu_custom_call.1} parent=11 // pred_check
          %p342 = pneg %p135
        $region26: #{tpu_custom_call.1} parent=11 // pred_check_branch
          %344 = sbr.rel (%p342) target = $region28
        $region27: #{tpu_custom_call.1} parent=11 // pred_region
          _
        $region28: #{tpu_custom_call.1} parent=11 // pred_fallthru
          _
        // Predicated region
        $region29: #{tpu_custom_call.1} parent=11 // pred_check
          %p345 = pneg %p156
        $region30: #{tpu_custom_call.1} parent=11 // pred_check_branch
          %347 = sbr.rel (%p345) target = $region32
        $region31: #{tpu_custom_call.1} parent=11 // pred_region
          _
        $region32: #{tpu_custom_call.1} parent=11 // pred_fallthru
          _
        // Predicated region
        $region33: #{tpu_custom_call.1} parent=11 // pred_check
          %p348 = pneg %p177
        $region34: #{tpu_custom_call.1} parent=11 // pred_check_branch
          %350 = sbr.rel (%p348) target = $region36
        $region35: #{tpu_custom_call.1} parent=11 // pred_region
          _
        $region36: #{tpu_custom_call.1} parent=11 // pred_fallthru
          _
        // Predicated region
        $region37: #{tpu_custom_call.1} parent=11 // pred_check
          %p351 = pneg %p198
        $region38: #{tpu_custom_call.1} parent=11 // pred_check_branch
          %353 = sbr.rel (%p351) target = $region40
        $region39: #{tpu_custom_call.1} parent=11 // pred_region
          _
        $region40: #{tpu_custom_call.1} parent=11 // pred_fallthru
          _
        // Predicated region
        $region41: #{tpu_custom_call.1} parent=11 // pred_check
          %p354 = pneg %p219
        $region42: #{tpu_custom_call.1} parent=11 // pred_check_branch
          %356 = sbr.rel (%p354) target = $region44
        $region43: #{tpu_custom_call.1} parent=11 // pred_region
          _
        $region44: #{tpu_custom_call.1} parent=11 // pred_fallthru
          _
        // Predicated region
        $region45: #{tpu_custom_call.1} parent=11 // pred_check
          %p357 = pneg %p240
        $region46: #{tpu_custom_call.1} parent=11 // pred_check_branch
          %359 = sbr.rel (%p357) target = $region48
        $region47: #{tpu_custom_call.1} parent=11 // pred_region
          _
        $region48: #{tpu_custom_call.1} parent=11 // pred_fallthru
          _
        // Predicated region
        $region49: #{tpu_custom_call.1} parent=11 // pred_check
          %p360 = pneg %p261
        $region50: #{tpu_custom_call.1} parent=11 // pred_check_branch
          %362 = sbr.rel (%p360) target = $region52
        $region51: #{tpu_custom_call.1} parent=11 // pred_region
          _
        $region52: #{tpu_custom_call.1} parent=11 // pred_fallthru
          _
        // Predicated region
        $region53: #{tpu_custom_call.1} parent=11 // pred_check
          %p363 = pneg %p282
        $region54: #{tpu_custom_call.1} parent=11 // pred_check_branch
          %365 = sbr.rel (%p363) target = $region56
        $region55: #{tpu_custom_call.1} parent=11 // pred_region
          %s367 = ssub.s32 8192, 8192
          %368 = vsyncadd [#allocation6], %s367
          %s369 = sshll.u32 [#allocation7], 4
          %s370 = int_to_ptr.vmem [resolvable:$true] %s369
          %375 = dma.hbm_to_vmem [thread:$0]  %s11, 8192, %s370, [#allocation6], 128, 128, 8
        $region56: #{tpu_custom_call.1} parent=11 // pred_fallthru
          _
      $region12: #{tpu_custom_call.1} parent=5 // pred_fallthru
        _
      %p376 = scmp.lt.s32.totalorder %s25, 2
      // Predicated region
      $region57: #{tpu_custom_call.1} parent=5 // pred_check
        %p377 = pneg %p376
      $region58: #{tpu_custom_call.1} parent=5 // pred_check_branch
        %379 = sbr.rel (%p377) target = $region60
      $region59: #{tpu_custom_call.1} parent=5 // pred_region
        // Predicated region
        $region61: #{tpu_custom_call.1} parent=59 // pred_check
          %p380 = pneg %p45
        $region62: #{tpu_custom_call.1} parent=59 // pred_check_branch
          %382 = sbr.rel (%p380) target = $region64
        $region63: #{tpu_custom_call.1} parent=59 // pred_region
          %s383 = sand.u32 %s35, 1
          %s384 = scalar_lea.sflag [#allocation3], %s383
          %s385 = sand.u32 %s35, 1
          %s386 = smul.addr %s385, 16
          %s387 = scalar_lea.vmem [#allocation2], %s386
          %s389 = ssub.s32 256, 256
          %390 = vsyncadd %s384, %s389
          %s391 = smul.addr %s25, 4
          %s392 = smul.addr %s391, 64
          %s393 = scalar_lea.hbm %s0, %s392
          %s395 = sshll.u32 %s387, 4
          %s396 = int_to_ptr.vmem [resolvable:$true] %s395
          %398 = dma.hbm_to_vmem [thread:$0]  %s393, 256, %s396, %s384
        $region64: #{tpu_custom_call.1} parent=59 // pred_fallthru
          _
      $region60: #{tpu_custom_call.1} parent=5 // pred_fallthru
        _
      %p399 = scmp.le.s32.totalorder 1, %s25
      %p400 = scmp.lt.s32.totalorder %s25, 3
      %p401 = pnand %p399, %p400
      %p402 = pneg %p401
      // Predicated region
      $region65: #{tpu_custom_call.1} parent=5 // pred_check
        _
      $region66: #{tpu_custom_call.1} parent=5 // pred_check_branch
        %404 = sbr.rel (%p401) target = $region68
      $region67: #{tpu_custom_call.1} parent=5 // pred_region
        %s405 = ssub.s32 %s25, 1
        %s406 = sand.u32 %s38, 1
        %s407 = scalar_lea.sflag [#allocation3], %s406
        %s408 = sand.u32 %s38, 1
        %s409 = smul.addr %s408, 16
        %s410 = scalar_lea.vmem [#allocation2], %s409
        // Predicated region
        $region69: #{tpu_custom_call.1} parent=67 // pred_check
          %p411 = pneg %p51
        $region70: #{tpu_custom_call.1} parent=67 // pred_check_branch
          %413 = sbr.rel (%p411) target = $region72
        $region71: #{tpu_custom_call.1} parent=67 // pred_region
          %414 = dma.done %s407, 256
        $region72: #{tpu_custom_call.1} parent=67 // pred_fallthru
          _
        // Predicated region
        $region73: #{tpu_custom_call.1} parent=67 // pred_check
          %p415 = pneg %p72
        $region74: #{tpu_custom_call.1} parent=67 // pred_check_branch
          %417 = sbr.rel (%p415) target = $region76
        $region75: #{tpu_custom_call.1} parent=67 // pred_region
          %418 = dma.done [#allocation6], 1024
        $region76: #{tpu_custom_call.1} parent=67 // pred_fallthru
          _
        // Predicated region
        $region77: #{tpu_custom_call.1} parent=67 // pred_check
          %p419 = pneg %p282
        $region78: #{tpu_custom_call.1} parent=67 // pred_check_branch
          %421 = sbr.rel (%p419) target = $region80
        $region79: #{tpu_custom_call.1} parent=67 // pred_region
          %422 = dma.done [#allocation6], 8192
        $region80: #{tpu_custom_call.1} parent=67 // pred_fallthru
          _
        %s423 = sand.u32 %s38, 1
        %s424 = scalar_lea.sflag [#allocation3], %s423
        %s425 = sand.u32 %s38, 1
        %s426 = smul.addr %s425, 16
        %s427 = scalar_lea.vmem [#allocation2], %s426
        %p428 = pneg %p51
        %p429 = pneg %p48
        %p430 = pneg %p72
        %p431 = pneg %p69
        %p432 = pneg %p93
        %p433 = pneg %p90
        %p434 = pneg %p114
        %p435 = pneg %p111
        %p436 = pneg %p135
        %p437 = pneg %p132
        %p438 = pneg %p156
        %p439 = pneg %p153
        %p440 = pneg %p177
        %p441 = pneg %p174
        %p442 = pneg %p198
        %p443 = pneg %p195
        %p444 = pneg %p219
        %p445 = pneg %p216
        %p446 = pneg %p240
        %p447 = pneg %p237
        %p448 = pneg %p261
        %p449 = pneg %p258
        %p450 = pneg %p282
        %p451 = pneg %p279
        %p452 = pneg %p308
        %p453 = pneg %p305
        %s454 = sand.u32 %s295, 1
        %s455 = scalar_lea.sflag [#allocation4], %s454
        %s456 = sand.u32 %s295, 1
        %s457 = smul.addr %s456, 8
        %s458 = scalar_lea.vmem [#allocation8], %s457
        %v459 = vld [vmem:[%s410] sm:$0xff]
        %v460 = vld [vmem:[%s410 + $0x8] sm:$0xff]
        %v461 = vld [vmem:[#allocation5] sm:$0xff]
        %v462 = vld [vmem:[#allocation5 + $0x8] sm:$0xff]
        %v463 = vld [vmem:[#allocation5 + $0x10] sm:$0xff]
        %v464 = vld [vmem:[#allocation5 + $0x18] sm:$0xff]
        %v465 = vld [vmem:[#allocation5 + $0x20] sm:$0x1]
        %v466 = vld [vmem:[#allocation5 + $0x28] sm:$0x1]
        %v467 = vld [vmem:[#allocation5 + $0x30] sm:$0x1]
        %v468 = vld [vmem:[#allocation5 + $0x38] sm:$0x1]
        %v469 = vmax.f32 %v459, 0.0
        %v470 = vmax.f32 %v460, 0.0
        %v471 = vld [vmem:[%s2] sm:$0xf]
        %v472 = vld [vmem:[%s3] sm:$0xff]
        %v473 = vld [vmem:[%s4] sm:$0xff]
        %475 = vset.pattern.permute.xlu0 4
        %476 = vperm.xlu0 %475, %v471
        %v477 = vpop.permute.xlu0 %476
        %v479 = vunpack.c.l.s4 839922192
        %v480 = vunpack.c.0.s8 %v479
        %v481 = vlaneseq
        %v482 = vshrl.u32 %v481, 7
        %v483 = vsub.s32 %v480, %v482
        %v484 = vrot.slane %v477, %v483
        %v486 = vmul.f32 %v469, %v484
        %v487 = vmul.f32 %v470, %v484
        %v490 = vcombine.high %v469, %v469
        %v491 = vcombine.high %v470, %v470
        %494 = vrot.lane.b32.xlu0 %v469, 17
        %v495 = vpop.permute.xlu0 %494
        %496 = vrot.lane.b32.xlu0 %v490, 17
        %v497 = vpop.permute.xlu0 %496
        %498 = vrot.lane.b32.xlu0 %v470, 17
        %v499 = vpop.permute.xlu0 %498
        %500 = vrot.lane.b32.xlu0 %v491, 17
        %v501 = vpop.permute.xlu0 %500
        %v502 = vlaneseq
        %v503 = vand.u32 %v502, 127
        %vm504 = vcmp.lt.s32.totalorder %v503, 17
        %v505 = vsel %vm504, %v499, %v501
        %v506 = vsel %vm504, %v497, %v499
        %v507 = vsel %vm504, %v495, %v497
        %v508 = vsel %vm504, %v501, %v495
        %v509 = vlaneseq
        %v510 = vshrl.u32 %v509, 7
        %v511 = vsub.s32 0, %v510
        %v512 = vrot.slane %v461, %v511
        %v513 = vlaneseq
        %v514 = vshrl.u32 %v513, 7
        %v515 = vsub.s32 0, %v514
        %v516 = vrot.slane %v462, %v515
        %v517 = vlaneseq
        %v518 = vshrl.u32 %v517, 7
        %v519 = vsub.s32 0, %v518
        %v520 = vrot.slane %v463, %v519
        %v521 = vlaneseq
        %v522 = vshrl.u32 %v521, 7
        %v523 = vsub.s32 0, %v522
        %v524 = vrot.slane %v464, %v523
        %v525 = vmul.f32 %v508, %v512
        %v526 = vmul.f32 %v507, %v516
        %v527 = vmul.f32 %v506, %v520
        %v528 = vmul.f32 %v505, %v524
        %529 = vset.pattern.permute.xlu0 0
        %530 = vperm.xlu0 %529, %v471
        %v531 = vpop.permute.xlu0 %530
        %v533 = vmul.f32 %v525, %v531
        %v534 = vmul.f32 %v526, %v531
        %v535 = vmul.f32 %v527, %v531
        %v536 = vmul.f32 %v528, %v531
        %v541 = vcombine.low %v533, %v534
        %v542 = vcombine.low %v535, %v536
        %v545 = vadd.f32 %v486, %v541
        %v546 = vadd.f32 %v487, %v542
        %547 = vrot.lane.b32.xlu0 %v469, 16
        %v548 = vpop.permute.xlu0 %547
        %549 = vrot.lane.b32.xlu0 %v490, 16
        %v550 = vpop.permute.xlu0 %549
        %551 = vrot.lane.b32.xlu0 %v470, 16
        %v552 = vpop.permute.xlu0 %551
        %553 = vrot.lane.b32.xlu0 %v491, 16
        %v554 = vpop.permute.xlu0 %553
        %vm555 = vcmp.lt.s32.totalorder %v503, 16
        %v556 = vsel %vm555, %v552, %v554
        %v557 = vsel %vm555, %v550, %v552
        %v558 = vsel %vm555, %v548, %v550
        %v559 = vsel %vm555, %v554, %v548
        %v560 = vlaneseq
        %v561 = vshrl.u32 %v560, 7
        %v562 = vsub.s32 1, %v561
        %v563 = vrot.slane %v461, %v562
        %v564 = vlaneseq
        %v565 = vshrl.u32 %v564, 7
        %v566 = vsub.s32 1, %v565
        %v567 = vrot.slane %v462, %v566
        %v568 = vlaneseq
        %v569 = vshrl.u32 %v568, 7
        %v570 = vsub.s32 1, %v569
        %v571 = vrot.slane %v463, %v570
        %v572 = vlaneseq
        %v573 = vshrl.u32 %v572, 7
        %v574 = vsub.s32 1, %v573
        %v575 = vrot.slane %v464, %v574
        %v576 = vmul.f32 %v559, %v563
        %v577 = vmul.f32 %v558, %v567
        %v578 = vmul.f32 %v557, %v571
        %v579 = vmul.f32 %v556, %v575
        %580 = vset.pattern.permute.xlu0 1
        %581 = vperm.xlu0 %580, %v471
        %v582 = vpop.permute.xlu0 %581
        %v584 = vmul.f32 %v576, %v582
        %v585 = vmul.f32 %v577, %v582
        %v586 = vmul.f32 %v578, %v582
        %v587 = vmul.f32 %v579, %v582
        %v592 = vcombine.low %v584, %v585
        %v593 = vcombine.low %v586, %v587
        %v596 = vadd.f32 %v545, %v592
        %v597 = vadd.f32 %v546, %v593
        %598 = vrot.lane.b32.xlu0 %v469, 15
        %v599 = vpop.permute.xlu0 %598
        %600 = vrot.lane.b32.xlu0 %v490, 15
        %v601 = vpop.permute.xlu0 %600
        %602 = vrot.lane.b32.xlu0 %v470, 15
        %v603 = vpop.permute.xlu0 %602
        %604 = vrot.lane.b32.xlu0 %v491, 15
        %v605 = vpop.permute.xlu0 %604
        %vm606 = vcmp.lt.s32.totalorder %v503, 15
        %v607 = vsel %vm606, %v603, %v605
        %v608 = vsel %vm606, %v601, %v603
        %v609 = vsel %vm606, %v599, %v601
        %v610 = vsel %vm606, %v605, %v599
        %v611 = vlaneseq
        %v612 = vshrl.u32 %v611, 7
        %v613 = vsub.s32 2, %v612
        %v614 = vrot.slane %v461, %v613
        %v615 = vlaneseq
        %v616 = vshrl.u32 %v615, 7
        %v617 = vsub.s32 2, %v616
        %v618 = vrot.slane %v462, %v617
        %v619 = vlaneseq
        %v620 = vshrl.u32 %v619, 7
        %v621 = vsub.s32 2, %v620
        %v622 = vrot.slane %v463, %v621
        %v623 = vlaneseq
        %v624 = vshrl.u32 %v623, 7
        %v625 = vsub.s32 2, %v624
        %v626 = vrot.slane %v464, %v625
        %v627 = vmul.f32 %v610, %v614
        %v628 = vmul.f32 %v609, %v618
        %v629 = vmul.f32 %v608, %v622
        %v630 = vmul.f32 %v607, %v626
        %631 = vset.pattern.permute.xlu0 2
        %632 = vperm.xlu0 %631, %v471
        %v633 = vpop.permute.xlu0 %632
        %v635 = vmul.f32 %v627, %v633
        %v636 = vmul.f32 %v628, %v633
        %v637 = vmul.f32 %v629, %v633
        %v638 = vmul.f32 %v630, %v633
        %v643 = vcombine.low %v635, %v636
        %v644 = vcombine.low %v637, %v638
        %v647 = vadd.f32 %v596, %v643
        %v648 = vadd.f32 %v597, %v644
        %649 = vrot.lane.b32.xlu0 %v469, 1
        %v650 = vpop.permute.xlu0 %649
        %651 = vrot.lane.b32.xlu0 %v490, 1
        %v652 = vpop.permute.xlu0 %651
        %653 = vrot.lane.b32.xlu0 %v470, 1
        %v654 = vpop.permute.xlu0 %653
        %655 = vrot.lane.b32.xlu0 %v491, 1
        %v656 = vpop.permute.xlu0 %655
        %vm657 = vcmp.lt.s32.totalorder %v503, 1
        %v658 = vsel %vm657, %v654, %v656
        %v659 = vsel %vm657, %v652, %v654
        %v660 = vsel %vm657, %v650, %v652
        %v661 = vsel %vm657, %v656, %v650
        %v662 = vlaneseq
        %v663 = vshrl.u32 %v662, 7
        %v664 = vsub.s32 3, %v663
        %v665 = vrot.slane %v461, %v664
        %v666 = vlaneseq
        %v667 = vshrl.u32 %v666, 7
        %v668 = vsub.s32 3, %v667
        %v669 = vrot.slane %v462, %v668
        %v670 = vlaneseq
        %v671 = vshrl.u32 %v670, 7
        %v672 = vsub.s32 3, %v671
        %v673 = vrot.slane %v463, %v672
        %v674 = vlaneseq
        %v675 = vshrl.u32 %v674, 7
        %v676 = vsub.s32 3, %v675
        %v677 = vrot.slane %v464, %v676
        %v678 = vmul.f32 %v661, %v665
        %v679 = vmul.f32 %v660, %v669
        %v680 = vmul.f32 %v659, %v673
        %v681 = vmul.f32 %v658, %v677
        %682 = vset.pattern.permute.xlu0 3
        %683 = vperm.xlu0 %682, %v471
        %v684 = vpop.permute.xlu0 %683
        %v686 = vmul.f32 %v678, %v684
        %v687 = vmul.f32 %v679, %v684
        %v688 = vmul.f32 %v680, %v684
        %v689 = vmul.f32 %v681, %v684
        %v694 = vcombine.low %v686, %v687
        %v695 = vcombine.low %v688, %v689
        %v698 = vadd.f32 %v647, %v694
        %v699 = vadd.f32 %v648, %v695
        %700 = vrot.lane.b32.xlu0 %v469, 127
        %v701 = vpop.permute.xlu0 %700
        %702 = vrot.lane.b32.xlu0 %v490, 127
        %v703 = vpop.permute.xlu0 %702
        %704 = vrot.lane.b32.xlu0 %v470, 127
        %v705 = vpop.permute.xlu0 %704
        %706 = vrot.lane.b32.xlu0 %v491, 127
        %v707 = vpop.permute.xlu0 %706
        %vm708 = vcmp.lt.s32.totalorder %v503, 127
        %v709 = vsel %vm708, %v705, %v707
        %v710 = vsel %vm708, %v703, %v705
        %v711 = vsel %vm708, %v701, %v703
        %v712 = vsel %vm708, %v707, %v701
        %v713 = vlaneseq
        %v714 = vshrl.u32 %v713, 7
        %v715 = vsub.s32 5, %v714
        %v716 = vrot.slane %v461, %v715
        %v717 = vlaneseq
        %v718 = vshrl.u32 %v717, 7
        %v719 = vsub.s32 5, %v718
        %v720 = vrot.slane %v462, %v719
        %v721 = vlaneseq
        %v722 = vshrl.u32 %v721, 7
        %v723 = vsub.s32 5, %v722
        %v724 = vrot.slane %v463, %v723
        %v725 = vlaneseq
        %v726 = vshrl.u32 %v725, 7
        %v727 = vsub.s32 5, %v726
        %v728 = vrot.slane %v464, %v727
        %v729 = vmul.f32 %v711, %v716
        %v730 = vmul.f32 %v710, %v720
        %v731 = vmul.f32 %v709, %v724
        %v732 = vmul.f32 %v712, %v728
        %733 = vset.pattern.permute.xlu0 5
        %734 = vperm.xlu0 %733, %v471
        %v735 = vpop.permute.xlu0 %734
        %v737 = vmul.f32 %v729, %v735
        %v738 = vmul.f32 %v730, %v735
        %v739 = vmul.f32 %v731, %v735
        %v740 = vmul.f32 %v732, %v735
        %v745 = vcombine.low %v737, %v738
        %v746 = vcombine.low %v739, %v740
        %v749 = vadd.f32 %v698, %v745
        %v750 = vadd.f32 %v699, %v746
        %751 = vrot.lane.b32.xlu0 %v469, 113
        %v752 = vpop.permute.xlu0 %751
        %753 = vrot.lane.b32.xlu0 %v490, 113
        %v754 = vpop.permute.xlu0 %753
        %755 = vrot.lane.b32.xlu0 %v470, 113
        %v756 = vpop.permute.xlu0 %755
        %757 = vrot.lane.b32.xlu0 %v491, 113
        %v758 = vpop.permute.xlu0 %757
        %vm759 = vcmp.lt.s32.totalorder %v503, 113
        %v760 = vsel %vm759, %v756, %v758
        %v761 = vsel %vm759, %v754, %v756
        %v762 = vsel %vm759, %v752, %v754
        %v763 = vsel %vm759, %v758, %v752
        %v764 = vlaneseq
        %v765 = vshrl.u32 %v764, 7
        %v766 = vsub.s32 6, %v765
        %v767 = vrot.slane %v461, %v766
        %v768 = vlaneseq
        %v769 = vshrl.u32 %v768, 7
        %v770 = vsub.s32 6, %v769
        %v771 = vrot.slane %v462, %v770
        %v772 = vlaneseq
        %v773 = vshrl.u32 %v772, 7
        %v774 = vsub.s32 6, %v773
        %v775 = vrot.slane %v463, %v774
        %v776 = vlaneseq
        %v777 = vshrl.u32 %v776, 7
        %v778 = vsub.s32 6, %v777
        %v779 = vrot.slane %v464, %v778
        %v780 = vmul.f32 %v762, %v767
        %v781 = vmul.f32 %v761, %v771
        %v782 = vmul.f32 %v760, %v775
        %v783 = vmul.f32 %v763, %v779
        %784 = vset.pattern.permute.xlu0 6
        %785 = vperm.xlu0 %784, %v471
        %v786 = vpop.permute.xlu0 %785
        %v788 = vmul.f32 %v780, %v786
        %v789 = vmul.f32 %v781, %v786
        %v790 = vmul.f32 %v782, %v786
        %v791 = vmul.f32 %v783, %v786
        %v796 = vcombine.low %v788, %v789
        %v797 = vcombine.low %v790, %v791
        %v800 = vadd.f32 %v749, %v796
        %v801 = vadd.f32 %v750, %v797
        %802 = vrot.lane.b32.xlu0 %v469, 112
        %v803 = vpop.permute.xlu0 %802
        %804 = vrot.lane.b32.xlu0 %v490, 112
        %v805 = vpop.permute.xlu0 %804
        %806 = vrot.lane.b32.xlu0 %v470, 112
        %v807 = vpop.permute.xlu0 %806
        %808 = vrot.lane.b32.xlu0 %v491, 112
        %v809 = vpop.permute.xlu0 %808
        %vm810 = vcmp.lt.s32.totalorder %v503, 112
        %v811 = vsel %vm810, %v807, %v809
        %v812 = vsel %vm810, %v805, %v807
        %v813 = vsel %vm810, %v803, %v805
        %v814 = vsel %vm810, %v809, %v803
        %v815 = vlaneseq
        %v816 = vshrl.u32 %v815, 7
        %v817 = vsub.s32 7, %v816
        %v818 = vrot.slane %v461, %v817
        %v819 = vlaneseq
        %v820 = vshrl.u32 %v819, 7
        %v821 = vsub.s32 7, %v820
        %v822 = vrot.slane %v462, %v821
        %v823 = vlaneseq
        %v824 = vshrl.u32 %v823, 7
        %v825 = vsub.s32 7, %v824
        %v826 = vrot.slane %v463, %v825
        %v827 = vlaneseq
        %v828 = vshrl.u32 %v827, 7
        %v829 = vsub.s32 7, %v828
        %v830 = vrot.slane %v464, %v829
        %v831 = vmul.f32 %v813, %v818
        %v832 = vmul.f32 %v812, %v822
        %v833 = vmul.f32 %v811, %v826
        %v834 = vmul.f32 %v814, %v830
        %835 = vset.pattern.permute.xlu0 7
        %836 = vperm.xlu0 %835, %v471
        %v837 = vpop.permute.xlu0 %836
        %v839 = vmul.f32 %v831, %v837
        %v840 = vmul.f32 %v832, %v837
        %v841 = vmul.f32 %v833, %v837
        %v842 = vmul.f32 %v834, %v837
        %v847 = vcombine.low %v839, %v840
        %v848 = vcombine.low %v841, %v842
        %v851 = vadd.f32 %v800, %v847
        %v852 = vadd.f32 %v801, %v848
        %853 = vrot.lane.b32.xlu0 %v469, 111
        %v854 = vpop.permute.xlu0 %853
        %855 = vrot.lane.b32.xlu0 %v490, 111
        %v856 = vpop.permute.xlu0 %855
        %857 = vrot.lane.b32.xlu0 %v470, 111
        %v858 = vpop.permute.xlu0 %857
        %859 = vrot.lane.b32.xlu0 %v491, 111
        %v860 = vpop.permute.xlu0 %859
        %vm861 = vcmp.lt.s32.totalorder %v503, 111
        %v862 = vsel %vm861, %v858, %v860
        %v863 = vsel %vm861, %v856, %v858
        %v864 = vsel %vm861, %v854, %v856
        %v865 = vsel %vm861, %v860, %v854
        %v866 = vlaneseq
        %v867 = vshrl.u32 %v866, 7
        %v868 = vsub.s32 0, %v867
        %v869 = vrot.slane %v465, %v868
        %v870 = vlaneseq
        %v871 = vshrl.u32 %v870, 7
        %v872 = vsub.s32 0, %v871
        %v873 = vrot.slane %v466, %v872
        %v874 = vlaneseq
        %v875 = vshrl.u32 %v874, 7
        %v876 = vsub.s32 0, %v875
        %v877 = vrot.slane %v467, %v876
        %v878 = vlaneseq
        %v879 = vshrl.u32 %v878, 7
        %v880 = vsub.s32 0, %v879
        %v881 = vrot.slane %v468, %v880
        %v882 = vmul.f32 %v864, %v869
        %v883 = vmul.f32 %v863, %v873
        %v884 = vmul.f32 %v862, %v877
        %v885 = vmul.f32 %v865, %v881
        %886 = vset.pattern.permute.xlu0 8
        %887 = vperm.xlu0 %886, %v471
        %v888 = vpop.permute.xlu0 %887
        %v890 = vmul.f32 %v882, %v888
        %v891 = vmul.f32 %v883, %v888
        %v892 = vmul.f32 %v884, %v888
        %v893 = vmul.f32 %v885, %v888
        %v898 = vcombine.low %v890, %v891
        %v899 = vcombine.low %v892, %v893
        %v902 = vadd.f32 %v851, %v898
        %v903 = vadd.f32 %v852, %v899
        %905 = vset.pattern.permute.xlu0 0
        %906 = vperm.xlu0 %905, %v472
        %v907 = vpop.permute.xlu0 %906
        %v911 = vlaneseq
        %v912 = vshrl.u32 %v911, 7
        %v913 = vsub.s32 0, %v912
        %v914 = vrot.slane %v902, %v913
        %v915 = vlaneseq
        %v916 = vshrl.u32 %v915, 7
        %v917 = vsub.s32 4, %v916
        %v918 = vrot.slane %v902, %v917
        %v919 = vlaneseq
        %v920 = vshrl.u32 %v919, 7
        %v921 = vsub.s32 0, %v920
        %v922 = vrot.slane %v903, %v921
        %v923 = vlaneseq
        %v924 = vshrl.u32 %v923, 7
        %v925 = vsub.s32 4, %v924
        %v926 = vrot.slane %v903, %v925
        %v931 = vlaneseq
        %v932 = vshrl.u32 %v931, 7
        %v933 = vsub.s32 0, %v932
        %v934 = vrot.slane %v914, %v933
        %v935 = vlaneseq
        %v936 = vshrl.u32 %v935, 7
        %v937 = vsub.s32 0, %v936
        %v938 = vrot.slane %v918, %v937
        %v939 = vlaneseq
        %v940 = vshrl.u32 %v939, 7
        %v941 = vsub.s32 0, %v940
        %v942 = vrot.slane %v922, %v941
        %v943 = vlaneseq
        %v944 = vshrl.u32 %v943, 7
        %v945 = vsub.s32 0, %v944
        %v946 = vrot.slane %v926, %v945
        %v947 = vmul.f32 %v907, %v934
        %v948 = vmul.f32 %v907, %v938
        %v949 = vmul.f32 %v907, %v942
        %v950 = vmul.f32 %v907, %v946
        %v951 = vadd.f32 %v947, 0.0
        %v952 = vadd.f32 %v948, 0.0
        %v953 = vadd.f32 %v949, 0.0
        %v954 = vadd.f32 %v950, 0.0
        %955 = vset.pattern.permute.xlu0 1
        %956 = vperm.xlu0 %955, %v472
        %v957 = vpop.permute.xlu0 %956
        %v959 = vlaneseq
        %v960 = vshrl.u32 %v959, 7
        %v961 = vsub.s32 1, %v960
        %v962 = vrot.slane %v902, %v961
        %v963 = vlaneseq
        %v964 = vshrl.u32 %v963, 7
        %v965 = vsub.s32 5, %v964
        %v966 = vrot.slane %v902, %v965
        %v967 = vlaneseq
        %v968 = vshrl.u32 %v967, 7
        %v969 = vsub.s32 1, %v968
        %v970 = vrot.slane %v903, %v969
        %v971 = vlaneseq
        %v972 = vshrl.u32 %v971, 7
        %v973 = vsub.s32 5, %v972
        %v974 = vrot.slane %v903, %v973
        %v979 = vlaneseq
        %v980 = vshrl.u32 %v979, 7
        %v981 = vsub.s32 1, %v980
        %v982 = vrot.slane %v962, %v981
        %v983 = vlaneseq
        %v984 = vshrl.u32 %v983, 7
        %v985 = vsub.s32 1, %v984
        %v986 = vrot.slane %v966, %v985
        %v987 = vlaneseq
        %v988 = vshrl.u32 %v987, 7
        %v989 = vsub.s32 1, %v988
        %v990 = vrot.slane %v970, %v989
        %v991 = vlaneseq
        %v992 = vshrl.u32 %v991, 7
        %v993 = vsub.s32 1, %v992
        %v994 = vrot.slane %v974, %v993
        %v995 = vmul.f32 %v957, %v982
        %v996 = vmul.f32 %v957, %v986
        %v997 = vmul.f32 %v957, %v990
        %v998 = vmul.f32 %v957, %v994
        %v999 = vadd.f32 %v951, %v995
        %v1000 = vadd.f32 %v952, %v996
        %v1001 = vadd.f32 %v953, %v997
        %v1002 = vadd.f32 %v954, %v998
        %1003 = vset.pattern.permute.xlu0 2
        %1004 = vperm.xlu0 %1003, %v472
        %v1005 = vpop.permute.xlu0 %1004
        %v1007 = vlaneseq
        %v1008 = vshrl.u32 %v1007, 7
        %v1009 = vsub.s32 2, %v1008
        %v1010 = vrot.slane %v902, %v1009
        %v1011 = vlaneseq
        %v1012 = vshrl.u32 %v1011, 7
        %v1013 = vsub.s32 6, %v1012
        %v1014 = vrot.slane %v902, %v1013
        %v1015 = vlaneseq
        %v1016 = vshrl.u32 %v1015, 7
        %v1017 = vsub.s32 2, %v1016
        %v1018 = vrot.slane %v903, %v1017
        %v1019 = vlaneseq
        %v1020 = vshrl.u32 %v1019, 7
        %v1021 = vsub.s32 6, %v1020
        %v1022 = vrot.slane %v903, %v1021
        %v1027 = vlaneseq
        %v1028 = vshrl.u32 %v1027, 7
        %v1029 = vsub.s32 2, %v1028
        %v1030 = vrot.slane %v1010, %v1029
        %v1031 = vlaneseq
        %v1032 = vshrl.u32 %v1031, 7
        %v1033 = vsub.s32 2, %v1032
        %v1034 = vrot.slane %v1014, %v1033
        %v1035 = vlaneseq
        %v1036 = vshrl.u32 %v1035, 7
        %v1037 = vsub.s32 2, %v1036
        %v1038 = vrot.slane %v1018, %v1037
        %v1039 = vlaneseq
        %v1040 = vshrl.u32 %v1039, 7
        %v1041 = vsub.s32 2, %v1040
        %v1042 = vrot.slane %v1022, %v1041
        %v1043 = vmul.f32 %v1005, %v1030
        %v1044 = vmul.f32 %v1005, %v1034
        %v1045 = vmul.f32 %v1005, %v1038
        %v1046 = vmul.f32 %v1005, %v1042
        %v1047 = vadd.f32 %v999, %v1043
        %v1048 = vadd.f32 %v1000, %v1044
        %v1049 = vadd.f32 %v1001, %v1045
        %v1050 = vadd.f32 %v1002, %v1046
        %1051 = vset.pattern.permute.xlu0 3
        %1052 = vperm.xlu0 %1051, %v472
        %v1053 = vpop.permute.xlu0 %1052
        %v1055 = vlaneseq
        %v1056 = vshrl.u32 %v1055, 7
        %v1057 = vsub.s32 3, %v1056
        %v1058 = vrot.slane %v902, %v1057
        %v1059 = vlaneseq
        %v1060 = vshrl.u32 %v1059, 7
        %v1061 = vsub.s32 7, %v1060
        %v1062 = vrot.slane %v902, %v1061
        %v1063 = vlaneseq
        %v1064 = vshrl.u32 %v1063, 7
        %v1065 = vsub.s32 3, %v1064
        %v1066 = vrot.slane %v903, %v1065
        %v1067 = vlaneseq
        %v1068 = vshrl.u32 %v1067, 7
        %v1069 = vsub.s32 7, %v1068
        %v1070 = vrot.slane %v903, %v1069
        %v1075 = vlaneseq
        %v1076 = vshrl.u32 %v1075, 7
        %v1077 = vsub.s32 3, %v1076
        %v1078 = vrot.slane %v1058, %v1077
        %v1079 = vlaneseq
        %v1080 = vshrl.u32 %v1079, 7
        %v1081 = vsub.s32 3, %v1080
        %v1082 = vrot.slane %v1062, %v1081
        %v1083 = vlaneseq
        %v1084 = vshrl.u32 %v1083, 7
        %v1085 = vsub.s32 3, %v1084
        %v1086 = vrot.slane %v1066, %v1085
        %v1087 = vlaneseq
        %v1088 = vshrl.u32 %v1087, 7
        %v1089 = vsub.s32 3, %v1088
        %v1090 = vrot.slane %v1070, %v1089
        %v1091 = vmul.f32 %v1053, %v1078
        %v1092 = vmul.f32 %v1053, %v1082
        %v1093 = vmul.f32 %v1053, %v1086
        %v1094 = vmul.f32 %v1053, %v1090
        %v1095 = vadd.f32 %v1047, %v1091
        %v1096 = vadd.f32 %v1048, %v1092
        %v1097 = vadd.f32 %v1049, %v1093
        %v1098 = vadd.f32 %v1050, %v1094
        %1100 = vset.pattern.permute.xlu0 0
        %1101 = vperm.xlu0 %1100, %v473
        %v1102 = vpop.permute.xlu0 %1101
        %v1104 = vadd.f32 %v1095, %v1102
        %v1105 = vadd.f32 %v1096, %v1102
        %v1106 = vadd.f32 %v1097, %v1102
        %v1107 = vadd.f32 %v1098, %v1102
        %v1108 = vmax.f32 %v1104, 0.0
        %v1109 = vmax.f32 %v1105, 0.0
        %v1110 = vmax.f32 %v1106, 0.0
        %v1111 = vmax.f32 %v1107, 0.0
        %v1112 = vld [vmem:[%s5] sm:$0xff]
        %v1113 = vld [vmem:[%s6] sm:$0xff]
        %v1114 = vld [vmem:[%s7] sm:$0xff]
        %1116 = vset.pattern.permute.xlu0 4
        %1117 = vperm.xlu0 %1116, %v1112
        %v1118 = vpop.permute.xlu0 %1117
        %v1120 = vmul.f32 %v1108, %v1118
        %v1121 = vmul.f32 %v1109, %v1118
        %v1122 = vmul.f32 %v1110, %v1118
        %v1123 = vmul.f32 %v1111, %v1118
        %1124 = vrot.lane.b32.xlu0 %v1108, 17
        %v1125 = vpop.permute.xlu0 %1124
        %1126 = vrot.lane.b32.xlu0 %v1109, 17
        %v1127 = vpop.permute.xlu0 %1126
        %1128 = vrot.lane.b32.xlu0 %v1110, 17
        %v1129 = vpop.permute.xlu0 %1128
        %1130 = vrot.lane.b32.xlu0 %v1111, 17
        %v1131 = vpop.permute.xlu0 %1130
        %v1132 = vsel %vm504, %v1129, %v1131
        %v1133 = vsel %vm504, %v1127, %v1129
        %v1134 = vsel %vm504, %v1125, %v1127
        %v1135 = vsel %vm504, %v1131, %v1125
        %v1136 = vmul.f32 %v1135, %v512
        %v1137 = vmul.f32 %v1134, %v516
        %v1138 = vmul.f32 %v1133, %v520
        %v1139 = vmul.f32 %v1132, %v524
        %1140 = vset.pattern.permute.xlu0 0
        %1141 = vperm.xlu0 %1140, %v1112
        %v1142 = vpop.permute.xlu0 %1141
        %v1144 = vmul.f32 %v1136, %v1142
        %v1145 = vmul.f32 %v1137, %v1142
        %v1146 = vmul.f32 %v1138, %v1142
        %v1147 = vmul.f32 %v1139, %v1142
        %v1148 = vadd.f32 %v1120, %v1144
        %v1149 = vadd.f32 %v1121, %v1145
        %v1150 = vadd.f32 %v1122, %v1146
        %v1151 = vadd.f32 %v1123, %v1147
        %1152 = vrot.lane.b32.xlu0 %v1108, 16
        %v1153 = vpop.permute.xlu0 %1152
        %1154 = vrot.lane.b32.xlu0 %v1109, 16
        %v1155 = vpop.permute.xlu0 %1154
        %1156 = vrot.lane.b32.xlu0 %v1110, 16
        %v1157 = vpop.permute.xlu0 %1156
        %1158 = vrot.lane.b32.xlu0 %v1111, 16
        %v1159 = vpop.permute.xlu0 %1158
        %v1160 = vsel %vm555, %v1157, %v1159
        %v1161 = vsel %vm555, %v1155, %v1157
        %v1162 = vsel %vm555, %v1153, %v1155
        %v1163 = vsel %vm555, %v1159, %v1153
        %v1164 = vmul.f32 %v1163, %v563
        %v1165 = vmul.f32 %v1162, %v567
        %v1166 = vmul.f32 %v1161, %v571
        %v1167 = vmul.f32 %v1160, %v575
        %1168 = vset.pattern.permute.xlu0 1
        %1169 = vperm.xlu0 %1168, %v1112
        %v1170 = vpop.permute.xlu0 %1169
        %v1172 = vmul.f32 %v1164, %v1170
        %v1173 = vmul.f32 %v1165, %v1170
        %v1174 = vmul.f32 %v1166, %v1170
        %v1175 = vmul.f32 %v1167, %v1170
        %v1176 = vadd.f32 %v1148, %v1172
        %v1177 = vadd.f32 %v1149, %v1173
        %v1178 = vadd.f32 %v1150, %v1174
        %v1179 = vadd.f32 %v1151, %v1175
        %1180 = vrot.lane.b32.xlu0 %v1108, 15
        %v1181 = vpop.permute.xlu0 %1180
        %1182 = vrot.lane.b32.xlu0 %v1109, 15
        %v1183 = vpop.permute.xlu0 %1182
        %1184 = vrot.lane.b32.xlu0 %v1110, 15
        %v1185 = vpop.permute.xlu0 %1184
        %1186 = vrot.lane.b32.xlu0 %v1111, 15
        %v1187 = vpop.permute.xlu0 %1186
        %v1188 = vsel %vm606, %v1185, %v1187
        %v1189 = vsel %vm606, %v1183, %v1185
        %v1190 = vsel %vm606, %v1181, %v1183
        %v1191 = vsel %vm606, %v1187, %v1181
        %v1192 = vmul.f32 %v1191, %v614
        %v1193 = vmul.f32 %v1190, %v618
        %v1194 = vmul.f32 %v1189, %v622
        %v1195 = vmul.f32 %v1188, %v626
        %1196 = vset.pattern.permute.xlu0 2
        %1197 = vperm.xlu0 %1196, %v1112
        %v1198 = vpop.permute.xlu0 %1197
        %v1200 = vmul.f32 %v1192, %v1198
        %v1201 = vmul.f32 %v1193, %v1198
        %v1202 = vmul.f32 %v1194, %v1198
        %v1203 = vmul.f32 %v1195, %v1198
        %v1204 = vadd.f32 %v1176, %v1200
        %v1205 = vadd.f32 %v1177, %v1201
        %v1206 = vadd.f32 %v1178, %v1202
        %v1207 = vadd.f32 %v1179, %v1203
        %1208 = vrot.lane.b32.xlu0 %v1108, 1
        %v1209 = vpop.permute.xlu0 %1208
        %1210 = vrot.lane.b32.xlu0 %v1109, 1
        %v1211 = vpop.permute.xlu0 %1210
        %1212 = vrot.lane.b32.xlu0 %v1110, 1
        %v1213 = vpop.permute.xlu0 %1212
        %1214 = vrot.lane.b32.xlu0 %v1111, 1
        %v1215 = vpop.permute.xlu0 %1214
        %v1216 = vsel %vm657, %v1213, %v1215
        %v1217 = vsel %vm657, %v1211, %v1213
        %v1218 = vsel %vm657, %v1209, %v1211
        %v1219 = vsel %vm657, %v1215, %v1209
        %v1220 = vmul.f32 %v1219, %v665
        %v1221 = vmul.f32 %v1218, %v669
        %v1222 = vmul.f32 %v1217, %v673
        %v1223 = vmul.f32 %v1216, %v677
        %1224 = vset.pattern.permute.xlu0 3
        %1225 = vperm.xlu0 %1224, %v1112
        %v1226 = vpop.permute.xlu0 %1225
        %v1228 = vmul.f32 %v1220, %v1226
        %v1229 = vmul.f32 %v1221, %v1226
        %v1230 = vmul.f32 %v1222, %v1226
        %v1231 = vmul.f32 %v1223, %v1226
        %v1232 = vadd.f32 %v1204, %v1228
        %v1233 = vadd.f32 %v1205, %v1229
        %v1234 = vadd.f32 %v1206, %v1230
        %v1235 = vadd.f32 %v1207, %v1231
        %1236 = vrot.lane.b32.xlu0 %v1108, 127
        %v1237 = vpop.permute.xlu0 %1236
        %1238 = vrot.lane.b32.xlu0 %v1109, 127
        %v1239 = vpop.permute.xlu0 %1238
        %1240 = vrot.lane.b32.xlu0 %v1110, 127
        %v1241 = vpop.permute.xlu0 %1240
        %1242 = vrot.lane.b32.xlu0 %v1111, 127
        %v1243 = vpop.permute.xlu0 %1242
        %v1244 = vsel %vm708, %v1241, %v1243
        %v1245 = vsel %vm708, %v1239, %v1241
        %v1246 = vsel %vm708, %v1237, %v1239
        %v1247 = vsel %vm708, %v1243, %v1237
        %v1248 = vmul.f32 %v1246, %v716
        %v1249 = vmul.f32 %v1245, %v720
        %v1250 = vmul.f32 %v1244, %v724
        %v1251 = vmul.f32 %v1247, %v728
        %1252 = vset.pattern.permute.xlu0 5
        %1253 = vperm.xlu0 %1252, %v1112
        %v1254 = vpop.permute.xlu0 %1253
        %v1256 = vmul.f32 %v1248, %v1254
        %v1257 = vmul.f32 %v1249, %v1254
        %v1258 = vmul.f32 %v1250, %v1254
        %v1259 = vmul.f32 %v1251, %v1254
        %v1260 = vadd.f32 %v1232, %v1256
        %v1261 = vadd.f32 %v1233, %v1257
        %v1262 = vadd.f32 %v1234, %v1258
        %v1263 = vadd.f32 %v1235, %v1259
        %1264 = vrot.lane.b32.xlu0 %v1108, 113
        %v1265 = vpop.permute.xlu0 %1264
        %1266 = vrot.lane.b32.xlu0 %v1109, 113
        %v1267 = vpop.permute.xlu0 %1266
        %1268 = vrot.lane.b32.xlu0 %v1110, 113
        %v1269 = vpop.permute.xlu0 %1268
        %1270 = vrot.lane.b32.xlu0 %v1111, 113
        %v1271 = vpop.permute.xlu0 %1270
        %v1272 = vsel %vm759, %v1269, %v1271
        %v1273 = vsel %vm759, %v1267, %v1269
        %v1274 = vsel %vm759, %v1265, %v1267
        %v1275 = vsel %vm759, %v1271, %v1265
        %v1276 = vmul.f32 %v1274, %v767
        %v1277 = vmul.f32 %v1273, %v771
        %v1278 = vmul.f32 %v1272, %v775
        %v1279 = vmul.f32 %v1275, %v779
        %1280 = vset.pattern.permute.xlu0 6
        %1281 = vperm.xlu0 %1280, %v1112
        %v1282 = vpop.permute.xlu0 %1281
        %v1284 = vmul.f32 %v1276, %v1282
        %v1285 = vmul.f32 %v1277, %v1282
        %v1286 = vmul.f32 %v1278, %v1282
        %v1287 = vmul.f32 %v1279, %v1282
        %v1288 = vadd.f32 %v1260, %v1284
        %v1289 = vadd.f32 %v1261, %v1285
        %v1290 = vadd.f32 %v1262, %v1286
        %v1291 = vadd.f32 %v1263, %v1287
        %1292 = vrot.lane.b32.xlu0 %v1108, 112
        %v1293 = vpop.permute.xlu0 %1292
        %1294 = vrot.lane.b32.xlu0 %v1109, 112
        %v1295 = vpop.permute.xlu0 %1294
        %1296 = vrot.lane.b32.xlu0 %v1110, 112
        %v1297 = vpop.permute.xlu0 %1296
        %1298 = vrot.lane.b32.xlu0 %v1111, 112
        %v1299 = vpop.permute.xlu0 %1298
        %v1300 = vsel %vm810, %v1297, %v1299
        %v1301 = vsel %vm810, %v1295, %v1297
        %v1302 = vsel %vm810, %v1293, %v1295
        %v1303 = vsel %vm810, %v1299, %v1293
        %v1304 = vmul.f32 %v1302, %v818
        %v1305 = vmul.f32 %v1301, %v822
        %v1306 = vmul.f32 %v1300, %v826
        %v1307 = vmul.f32 %v1303, %v830
        %1308 = vset.pattern.permute.xlu0 7
        %1309 = vperm.xlu0 %1308, %v1112
        %v1310 = vpop.permute.xlu0 %1309
        %v1312 = vmul.f32 %v1304, %v1310
        %v1313 = vmul.f32 %v1305, %v1310
        %v1314 = vmul.f32 %v1306, %v1310
        %v1315 = vmul.f32 %v1307, %v1310
        %v1316 = vadd.f32 %v1288, %v1312
        %v1317 = vadd.f32 %v1289, %v1313
        %v1318 = vadd.f32 %v1290, %v1314
        %v1319 = vadd.f32 %v1291, %v1315
        %1320 = vrot.lane.b32.xlu0 %v1108, 111
        %v1321 = vpop.permute.xlu0 %1320
        %1322 = vrot.lane.b32.xlu0 %v1109, 111
        %v1323 = vpop.permute.xlu0 %1322
        %1324 = vrot.lane.b32.xlu0 %v1110, 111
        %v1325 = vpop.permute.xlu0 %1324
        %1326 = vrot.lane.b32.xlu0 %v1111, 111
        %v1327 = vpop.permute.xlu0 %1326
        %v1328 = vsel %vm861, %v1325, %v1327
        %v1329 = vsel %vm861, %v1323, %v1325
        %v1330 = vsel %vm861, %v1321, %v1323
        %v1331 = vsel %vm861, %v1327, %v1321
        %v1332 = vmul.f32 %v1330, %v869
        %v1333 = vmul.f32 %v1329, %v873
        %v1334 = vmul.f32 %v1328, %v877
        %v1335 = vmul.f32 %v1331, %v881
        %1336 = vset.pattern.permute.xlu0 8
        %1337 = vperm.xlu0 %1336, %v1112
        %v1338 = vpop.permute.xlu0 %1337
        %v1340 = vmul.f32 %v1332, %v1338
        %v1341 = vmul.f32 %v1333, %v1338
        %v1342 = vmul.f32 %v1334, %v1338
        %v1343 = vmul.f32 %v1335, %v1338
        %v1344 = vadd.f32 %v1316, %v1340
        %v1345 = vadd.f32 %v1317, %v1341
        %v1346 = vadd.f32 %v1318, %v1342
        %v1347 = vadd.f32 %v1319, %v1343
        %1349 = vset.pattern.permute.xlu0 0
        %1350 = vperm.xlu0 %1349, %v1114
        %v1351 = vpop.permute.xlu0 %1350
        %vm1353 = vcmask 64512
        %v1355 = vsel %vm1353, %v1113, 0
        %1357 = vmatprep.subr.mxu0 %v1345
        %1358 = vmatpush1.msra.mxu0 %v1344
        %1359 = vmatprep.subr.mxu0 0.0
        %1360 = vmatpush1.msra.mxu0 0.0
        %1361 = vmatprep.subr.mxu0 0.0
        %1362 = vmatpush1.msra.mxu0 0.0
        %1363 = vmatprep.subr.mxu0 0.0
        %1364 = vmatpush1.msra.mxu0 0.0
        %1365 = vmatprep.subr.mxu0 0.0
        %1366 = vmatpush1.msra.mxu0 0.0
        %1367 = vmatprep.subr.mxu0 0.0
        %1368 = vmatpush1.msra.mxu0 0.0
        %1369 = vmatprep.subr.mxu0 0.0
        %1370 = vmatpush1.msra.mxu0 0.0
        %1371 = vmatprep.subr.mxu0 0.0
        %1372 = vmatpush1.msra.mxu0 0.0
        %1373 = vmatprep.subr.mxu0 0.0
        %1374 = vmatpush1.msra.mxu0 0.0
        %1375 = vmatprep.subr.mxu0 0.0
        %1376 = vmatpush1.msra.mxu0 0.0
        %1377 = vmatprep.subr.mxu0 0.0
        %1378 = vmatpush1.msra.mxu0 0.0
        %1379 = vmatprep.subr.mxu0 0.0
        %1380 = vmatpush1.msra.mxu0 0.0
        %1381 = vmatprep.subr.mxu0 0.0
        %1382 = vmatpush1.msra.mxu0 0.0
        %1383 = vmatprep.subr.mxu0 0.0
        %1384 = vmatpush1.msra.mxu0 0.0
        %1385 = vmatprep.subr.mxu0 0.0
        %1386 = vmatpush1.msra.mxu0 0.0
        %1387 = vmatprep.subr.mxu0 0.0
        %1388 = vmatpush1.msra.mxu0 0.0
        %1389 = vmatprep.subr.mxu0 0.0
        %1390 = vmatpush1.msra.mxu0 0.0
        %1391 = vmatprep.subr.mxu0 0.0
        %1392 = vmatpush1.msra.mxu0 0.0
        %1393 = vmatprep.subr.mxu0 0.0
        %1394 = vmatpush1.msra.mxu0 0.0
        %1395 = vmatprep.subr.mxu0 0.0
        %1396 = vmatpush1.msra.mxu0 0.0
        %1397 = vmatprep.subr.mxu0 0.0
        %1398 = vmatpush1.msra.mxu0 0.0
        %1399 = vmatprep.subr.mxu0 0.0
        %1400 = vmatpush1.msra.mxu0 0.0
        %1401 = vmatprep.subr.mxu0 0.0
        %1402 = vmatpush1.msra.mxu0 0.0
        %1403 = vmatprep.subr.mxu0 0.0
        %1404 = vmatpush1.msra.mxu0 0.0
        %1405 = vmatprep.subr.mxu0 0.0
        %1406 = vmatpush1.msra.mxu0 0.0
        %1407 = vmatprep.subr.mxu0 0.0
        %1408 = vmatpush1.msra.mxu0 0.0
        %1409 = vmatprep.subr.mxu0 0.0
        %1410 = vmatpush1.msra.mxu0 0.0
        %1411 = vmatprep.subr.mxu0 0.0
        %1412 = vmatpush1.msra.mxu0 0.0
        %1413 = vmatprep.subr.mxu0 0.0
        %1414 = vmatpush1.msra.mxu0 0.0
        %1415 = vmatprep.subr.mxu0 0.0
        %1416 = vmatpush1.msra.mxu0 0.0
        %1417 = vmatprep.subr.mxu0 0.0
        %1418 = vmatpush1.msra.mxu0 0.0
        %1419 = vmatprep.subr.mxu0 0.0
        %1420 = vmatpush1.msra.mxu0 0.0
        %1421 = vmatprep.mubr.f32.mxu0 0.0
        %1422 = vmatmul.mubr.f32.gmra.mrb[0].mxu0 %v1355
        %v1423 = vpop.f32.mrb[0].mxu0
        %v1424 = vadd.f32 %v1351, %v1423
        %v1425 = vpop.f32.mrb[0].mxu0
        %v1426 = vadd.f32 %v1351, %v1425
        %1427 = vdwg.mxu0
        %1428 = vmatprep.subr.mxu0 %v1347
        %1429 = vmatpush1.msra.mxu0 %v1346
        %1430 = vmatprep.subr.mxu0 0.0
        %1431 = vmatpush1.msra.mxu0 0.0
        %1432 = vmatprep.subr.mxu0 0.0
        %1433 = vmatpush1.msra.mxu0 0.0
        %1434 = vmatprep.subr.mxu0 0.0
        %1435 = vmatpush1.msra.mxu0 0.0
        %1436 = vmatprep.subr.mxu0 0.0
        %1437 = vmatpush1.msra.mxu0 0.0
        %1438 = vmatprep.subr.mxu0 0.0
        %1439 = vmatpush1.msra.mxu0 0.0
        %1440 = vmatprep.subr.mxu0 0.0
        %1441 = vmatpush1.msra.mxu0 0.0
        %1442 = vmatprep.subr.mxu0 0.0
        %1443 = vmatpush1.msra.mxu0 0.0
        %1444 = vmatprep.subr.mxu0 0.0
        %1445 = vmatpush1.msra.mxu0 0.0
        %1446 = vmatprep.subr.mxu0 0.0
        %1447 = vmatpush1.msra.mxu0 0.0
        %1448 = vmatprep.subr.mxu0 0.0
        %1449 = vmatpush1.msra.mxu0 0.0
        %1450 = vmatprep.subr.mxu0 0.0
        %1451 = vmatpush1.msra.mxu0 0.0
        %1452 = vmatprep.subr.mxu0 0.0
        %1453 = vmatpush1.msra.mxu0 0.0
        %1454 = vmatprep.subr.mxu0 0.0
        %1455 = vmatpush1.msra.mxu0 0.0
        %1456 = vmatprep.subr.mxu0 0.0
        %1457 = vmatpush1.msra.mxu0 0.0
        %1458 = vmatprep.subr.mxu0 0.0
        %1459 = vmatpush1.msra.mxu0 0.0
        %1460 = vmatprep.subr.mxu0 0.0
        %1461 = vmatpush1.msra.mxu0 0.0
        %1462 = vmatprep.subr.mxu0 0.0
        %1463 = vmatpush1.msra.mxu0 0.0
        %1464 = vmatprep.subr.mxu0 0.0
        %1465 = vmatpush1.msra.mxu0 0.0
        %1466 = vmatprep.subr.mxu0 0.0
        %1467 = vmatpush1.msra.mxu0 0.0
        %1468 = vmatprep.subr.mxu0 0.0
        %1469 = vmatpush1.msra.mxu0 0.0
        %1470 = vmatprep.subr.mxu0 0.0
        %1471 = vmatpush1.msra.mxu0 0.0
        %1472 = vmatprep.subr.mxu0 0.0
        %1473 = vmatpush1.msra.mxu0 0.0
        %1474 = vmatprep.subr.mxu0 0.0
        %1475 = vmatpush1.msra.mxu0 0.0
        %1476 = vmatprep.subr.mxu0 0.0
        %1477 = vmatpush1.msra.mxu0 0.0
        %1478 = vmatprep.subr.mxu0 0.0
        %1479 = vmatpush1.msra.mxu0 0.0
        %1480 = vmatprep.subr.mxu0 0.0
        %1481 = vmatpush1.msra.mxu0 0.0
        %1482 = vmatprep.subr.mxu0 0.0
        %1483 = vmatpush1.msra.mxu0 0.0
        %1484 = vmatprep.subr.mxu0 0.0
        %1485 = vmatpush1.msra.mxu0 0.0
        %1486 = vmatprep.subr.mxu0 0.0
        %1487 = vmatpush1.msra.mxu0 0.0
        %1488 = vmatprep.subr.mxu0 0.0
        %1489 = vmatpush1.msra.mxu0 0.0
        %1490 = vmatprep.subr.mxu0 0.0
        %1491 = vmatpush1.msra.mxu0 0.0
        %1492 = vmatprep.mubr.f32.mxu0 0.0
        %1493 = vmatmul.mubr.f32.gmra.mrb[0].mxu0 %v1355
        %v1494 = vpop.f32.mrb[0].mxu0
        %v1495 = vadd.f32 %v1351, %v1494
        %v1496 = vpop.f32.mrb[0].mxu0
        %v1497 = vadd.f32 %v1351, %v1496
        %1498 = vdwg.mxu0
        %v1499 = vld [vmem:[%s10] sm:$0xff]
        %v1500 = vld [vmem:[%s10 + $0x8] sm:$0xff]
        %v1501 = vld [vmem:[%s10 + $0x10] sm:$0xff]
        %v1502 = vld [vmem:[%s10 + $0x18] sm:$0xff]
        %v1503 = vld [vmem:[%s10 + $0x20] sm:$0x1]
        %v1504 = vld [vmem:[%s10 + $0x28] sm:$0x1]
        %v1505 = vld [vmem:[%s10 + $0x30] sm:$0x1]
        %v1506 = vld [vmem:[%s10 + $0x38] sm:$0x1]
        %v1507 = vld [vmem:[#allocation7] sm:$0xff]
        %v1508 = vld [vmem:[#allocation7 + $0x8] sm:$0xff]
        %v1509 = vld [vmem:[#allocation7 + $0x10] sm:$0xff]
        %v1510 = vld [vmem:[#allocation7 + $0x18] sm:$0xff]
        %v1511 = vld [vmem:[#allocation7 + $0x20] sm:$0xff]
        %v1512 = vld [vmem:[#allocation7 + $0x28] sm:$0xff]
        %v1513 = vld [vmem:[#allocation7 + $0x30] sm:$0xff]
        %v1514 = vld [vmem:[#allocation7 + $0x38] sm:$0xff]
        %v1515 = vld [vmem:[#allocation7 + $0x40] sm:$0xff]
        %v1516 = vld [vmem:[#allocation7 + $0x48] sm:$0xff]
        %v1517 = vld [vmem:[#allocation7 + $0x50] sm:$0xff]
        %v1518 = vld [vmem:[#allocation7 + $0x58] sm:$0xff]
        %v1519 = vld [vmem:[#allocation7 + $0x60] sm:$0xff]
        %v1520 = vld [vmem:[#allocation7 + $0x68] sm:$0xff]
        %v1521 = vld [vmem:[#allocation7 + $0x70] sm:$0xff]
        %v1522 = vld [vmem:[#allocation7 + $0x78] sm:$0xff]
        %v1523 = vld [vmem:[#allocation7 + $0x80] sm:$0xff]
        %v1524 = vld [vmem:[#allocation7 + $0x88] sm:$0xff]
        %v1525 = vld [vmem:[#allocation7 + $0x90] sm:$0xff]
        %v1526 = vld [vmem:[#allocation7 + $0x98] sm:$0xff]
        %v1527 = vld [vmem:[#allocation7 + $0xa0] sm:$0xff]
        %v1528 = vld [vmem:[#allocation7 + $0xa8] sm:$0xff]
        %v1529 = vld [vmem:[#allocation7 + $0xb0] sm:$0xff]
        %v1530 = vld [vmem:[#allocation7 + $0xb8] sm:$0xff]
        %v1531 = vld [vmem:[#allocation7 + $0xc0] sm:$0xff]
        %v1532 = vld [vmem:[#allocation7 + $0xc8] sm:$0xff]
        %v1533 = vld [vmem:[#allocation7 + $0xd0] sm:$0xff]
        %v1534 = vld [vmem:[#allocation7 + $0xd8] sm:$0xff]
        %v1535 = vld [vmem:[#allocation7 + $0xe0] sm:$0xff]
        %v1536 = vld [vmem:[#allocation7 + $0xe8] sm:$0xff]
        %v1537 = vld [vmem:[#allocation7 + $0xf0] sm:$0xff]
        %v1538 = vld [vmem:[#allocation7 + $0xf8] sm:$0xff]
        %v1539 = vld [vmem:[#allocation7 + $0x100] sm:$0xff]
        %v1540 = vld [vmem:[#allocation7 + $0x108] sm:$0xff]
        %v1541 = vld [vmem:[#allocation7 + $0x110] sm:$0xff]
        %v1542 = vld [vmem:[#allocation7 + $0x118] sm:$0xff]
        %v1543 = vld [vmem:[#allocation7 + $0x120] sm:$0xff]
        %v1544 = vld [vmem:[#allocation7 + $0x128] sm:$0xff]
        %v1545 = vld [vmem:[#allocation7 + $0x130] sm:$0xff]
        %v1546 = vld [vmem:[#allocation7 + $0x138] sm:$0xff]
        %v1547 = vld [vmem:[#allocation7 + $0x140] sm:$0xff]
        %v1548 = vld [vmem:[#allocation7 + $0x148] sm:$0xff]
        %v1549 = vld [vmem:[#allocation7 + $0x150] sm:$0xff]
        %v1550 = vld [vmem:[#allocation7 + $0x158] sm:$0xff]
        %v1551 = vld [vmem:[#allocation7 + $0x160] sm:$0xff]
        %v1552 = vld [vmem:[#allocation7 + $0x168] sm:$0xff]
        %v1553 = vld [vmem:[#allocation7 + $0x170] sm:$0xff]
        %v1554 = vld [vmem:[#allocation7 + $0x178] sm:$0xff]
        %v1555 = vld [vmem:[#allocation7 + $0x180] sm:$0xff]
        %v1556 = vld [vmem:[#allocation7 + $0x188] sm:$0xff]
        %v1557 = vld [vmem:[#allocation7 + $0x190] sm:$0xff]
        %v1558 = vld [vmem:[#allocation7 + $0x198] sm:$0xff]
        %v1559 = vld [vmem:[#allocation7 + $0x1a0] sm:$0xff]
        %v1560 = vld [vmem:[#allocation7 + $0x1a8] sm:$0xff]
        %v1561 = vld [vmem:[#allocation7 + $0x1b0] sm:$0xff]
        %v1562 = vld [vmem:[#allocation7 + $0x1b8] sm:$0xff]
        %v1563 = vld [vmem:[#allocation7 + $0x1c0] sm:$0xff]
        %v1564 = vld [vmem:[#allocation7 + $0x1c8] sm:$0xff]
        %v1565 = vld [vmem:[#allocation7 + $0x1d0] sm:$0xff]
        %v1566 = vld [vmem:[#allocation7 + $0x1d8] sm:$0xff]
        %v1567 = vld [vmem:[#allocation7 + $0x1e0] sm:$0xff]
        %v1568 = vld [vmem:[#allocation7 + $0x1e8] sm:$0xff]
        %v1569 = vld [vmem:[#allocation7 + $0x1f0] sm:$0xff]
        %v1570 = vld [vmem:[#allocation7 + $0x1f8] sm:$0xff]
        %1571 = vrot.lane.b32.xlu0 %v1424, 17
        %v1572 = vpop.permute.xlu0 %1571
        %1573 = vrot.lane.b32.xlu0 %v1426, 17
        %v1574 = vpop.permute.xlu0 %1573
        %1575 = vrot.lane.b32.xlu0 %v1495, 17
        %v1576 = vpop.permute.xlu0 %1575
        %1577 = vrot.lane.b32.xlu0 %v1497, 17
        %v1578 = vpop.permute.xlu0 %1577
        %v1579 = vsel %vm504, %v1576, %v1578
        %v1580 = vsel %vm504, %v1574, %v1576
        %v1581 = vsel %vm504, %v1572, %v1574
        %v1582 = vsel %vm504, %v1578, %v1572
        %v1583 = vmul.f32 %v1582, %v512
        %v1584 = vmul.f32 %v1581, %v516
        %v1585 = vmul.f32 %v1580, %v520
        %v1586 = vmul.f32 %v1579, %v524
        %v1587 = vlaneseq
        %v1588 = vshrl.u32 %v1587, 7
        %v1589 = vsub.s32 0, %v1588
        %v1590 = vrot.slane %v1499, %v1589
        %v1591 = vlaneseq
        %v1592 = vshrl.u32 %v1591, 7
        %v1593 = vsub.s32 0, %v1592
        %v1594 = vrot.slane %v1500, %v1593
        %v1595 = vlaneseq
        %v1596 = vshrl.u32 %v1595, 7
        %v1597 = vsub.s32 0, %v1596
        %v1598 = vrot.slane %v1501, %v1597
        %v1599 = vlaneseq
        %v1600 = vshrl.u32 %v1599, 7
        %v1601 = vsub.s32 0, %v1600
        %v1602 = vrot.slane %v1502, %v1601
        %v1603 = vadd.f32 %v1583, %v1590
        %v1604 = vadd.f32 %v1584, %v1594
        %v1605 = vadd.f32 %v1585, %v1598
        %v1606 = vadd.f32 %v1586, %v1602
        %v1607 = vmax.f32 %v1424, %v1603
        %v1608 = vmax.f32 %v1426, %v1604
        %v1609 = vmax.f32 %v1495, %v1605
        %v1610 = vmax.f32 %v1497, %v1606
        %1611 = vrot.lane.b32.xlu0 %v1424, 16
        %v1612 = vpop.permute.xlu0 %1611
        %1613 = vrot.lane.b32.xlu0 %v1426, 16
        %v1614 = vpop.permute.xlu0 %1613
        %1615 = vrot.lane.b32.xlu0 %v1495, 16
        %v1616 = vpop.permute.xlu0 %1615
        %1617 = vrot.lane.b32.xlu0 %v1497, 16
        %v1618 = vpop.permute.xlu0 %1617
        %v1619 = vsel %vm555, %v1616, %v1618
        %v1620 = vsel %vm555, %v1614, %v1616
        %v1621 = vsel %vm555, %v1612, %v1614
        %v1622 = vsel %vm555, %v1618, %v1612
        %v1623 = vmul.f32 %v1622, %v563
        %v1624 = vmul.f32 %v1621, %v567
        %v1625 = vmul.f32 %v1620, %v571
        %v1626 = vmul.f32 %v1619, %v575
        %v1627 = vlaneseq
        %v1628 = vshrl.u32 %v1627, 7
        %v1629 = vsub.s32 1, %v1628
        %v1630 = vrot.slane %v1499, %v1629
        %v1631 = vlaneseq
        %v1632 = vshrl.u32 %v1631, 7
        %v1633 = vsub.s32 1, %v1632
        %v1634 = vrot.slane %v1500, %v1633
        %v1635 = vlaneseq
        %v1636 = vshrl.u32 %v1635, 7
        %v1637 = vsub.s32 1, %v1636
        %v1638 = vrot.slane %v1501, %v1637
        %v1639 = vlaneseq
        %v1640 = vshrl.u32 %v1639, 7
        %v1641 = vsub.s32 1, %v1640
        %v1642 = vrot.slane %v1502, %v1641
        %v1643 = vadd.f32 %v1623, %v1630
        %v1644 = vadd.f32 %v1624, %v1634
        %v1645 = vadd.f32 %v1625, %v1638
        %v1646 = vadd.f32 %v1626, %v1642
        %v1647 = vmax.f32 %v1607, %v1643
        %v1648 = vmax.f32 %v1608, %v1644
        %v1649 = vmax.f32 %v1609, %v1645
        %v1650 = vmax.f32 %v1610, %v1646
        %1651 = vrot.lane.b32.xlu0 %v1424, 15
        %v1652 = vpop.permute.xlu0 %1651
        %1653 = vrot.lane.b32.xlu0 %v1426, 15
        %v1654 = vpop.permute.xlu0 %1653
        %1655 = vrot.lane.b32.xlu0 %v1495, 15
        %v1656 = vpop.permute.xlu0 %1655
        %1657 = vrot.lane.b32.xlu0 %v1497, 15
        %v1658 = vpop.permute.xlu0 %1657
        %v1659 = vsel %vm606, %v1656, %v1658
        %v1660 = vsel %vm606, %v1654, %v1656
        %v1661 = vsel %vm606, %v1652, %v1654
        %v1662 = vsel %vm606, %v1658, %v1652
        %v1663 = vmul.f32 %v1662, %v614
        %v1664 = vmul.f32 %v1661, %v618
        %v1665 = vmul.f32 %v1660, %v622
        %v1666 = vmul.f32 %v1659, %v626
        %v1667 = vlaneseq
        %v1668 = vshrl.u32 %v1667, 7
        %v1669 = vsub.s32 2, %v1668
        %v1670 = vrot.slane %v1499, %v1669
        %v1671 = vlaneseq
        %v1672 = vshrl.u32 %v1671, 7
        %v1673 = vsub.s32 2, %v1672
        %v1674 = vrot.slane %v1500, %v1673
        %v1675 = vlaneseq
        %v1676 = vshrl.u32 %v1675, 7
        %v1677 = vsub.s32 2, %v1676
        %v1678 = vrot.slane %v1501, %v1677
        %v1679 = vlaneseq
        %v1680 = vshrl.u32 %v1679, 7
        %v1681 = vsub.s32 2, %v1680
        %v1682 = vrot.slane %v1502, %v1681
        %v1683 = vadd.f32 %v1663, %v1670
        %v1684 = vadd.f32 %v1664, %v1674
        %v1685 = vadd.f32 %v1665, %v1678
        %v1686 = vadd.f32 %v1666, %v1682
        %v1687 = vmax.f32 %v1647, %v1683
        %v1688 = vmax.f32 %v1648, %v1684
        %v1689 = vmax.f32 %v1649, %v1685
        %v1690 = vmax.f32 %v1650, %v1686
        %1691 = vrot.lane.b32.xlu0 %v1424, 1
        %v1692 = vpop.permute.xlu0 %1691
        %1693 = vrot.lane.b32.xlu0 %v1426, 1
        %v1694 = vpop.permute.xlu0 %1693
        %1695 = vrot.lane.b32.xlu0 %v1495, 1
        %v1696 = vpop.permute.xlu0 %1695
        %1697 = vrot.lane.b32.xlu0 %v1497, 1
        %v1698 = vpop.permute.xlu0 %1697
        %v1699 = vsel %vm657, %v1696, %v1698
        %v1700 = vsel %vm657, %v1694, %v1696
        %v1701 = vsel %vm657, %v1692, %v1694
        %v1702 = vsel %vm657, %v1698, %v1692
        %v1703 = vmul.f32 %v1702, %v665
        %v1704 = vmul.f32 %v1701, %v669
        %v1705 = vmul.f32 %v1700, %v673
        %v1706 = vmul.f32 %v1699, %v677
        %v1707 = vlaneseq
        %v1708 = vshrl.u32 %v1707, 7
        %v1709 = vsub.s32 3, %v1708
        %v1710 = vrot.slane %v1499, %v1709
        %v1711 = vlaneseq
        %v1712 = vshrl.u32 %v1711, 7
        %v1713 = vsub.s32 3, %v1712
        %v1714 = vrot.slane %v1500, %v1713
        %v1715 = vlaneseq
        %v1716 = vshrl.u32 %v1715, 7
        %v1717 = vsub.s32 3, %v1716
        %v1718 = vrot.slane %v1501, %v1717
        %v1719 = vlaneseq
        %v1720 = vshrl.u32 %v1719, 7
        %v1721 = vsub.s32 3, %v1720
        %v1722 = vrot.slane %v1502, %v1721
        %v1723 = vadd.f32 %v1703, %v1710
        %v1724 = vadd.f32 %v1704, %v1714
        %v1725 = vadd.f32 %v1705, %v1718
        %v1726 = vadd.f32 %v1706, %v1722
        %v1727 = vmax.f32 %v1687, %v1723
        %v1728 = vmax.f32 %v1688, %v1724
        %v1729 = vmax.f32 %v1689, %v1725
        %v1730 = vmax.f32 %v1690, %v1726
        %1731 = vrot.lane.b32.xlu0 %v1424, 127
        %v1732 = vpop.permute.xlu0 %1731
        %1733 = vrot.lane.b32.xlu0 %v1426, 127
        %v1734 = vpop.permute.xlu0 %1733
        %1735 = vrot.lane.b32.xlu0 %v1495, 127
        %v1736 = vpop.permute.xlu0 %1735
        %1737 = vrot.lane.b32.xlu0 %v1497, 127
        %v1738 = vpop.permute.xlu0 %1737
        %v1739 = vsel %vm708, %v1736, %v1738
        %v1740 = vsel %vm708, %v1734, %v1736
        %v1741 = vsel %vm708, %v1732, %v1734
        %v1742 = vsel %vm708, %v1738, %v1732
        %v1743 = vmul.f32 %v1741, %v716
        %v1744 = vmul.f32 %v1740, %v720
        %v1745 = vmul.f32 %v1739, %v724
        %v1746 = vmul.f32 %v1742, %v728
        %v1747 = vlaneseq
        %v1748 = vshrl.u32 %v1747, 7
        %v1749 = vsub.s32 5, %v1748
        %v1750 = vrot.slane %v1499, %v1749
        %v1751 = vlaneseq
        %v1752 = vshrl.u32 %v1751, 7
        %v1753 = vsub.s32 5, %v1752
        %v1754 = vrot.slane %v1500, %v1753
        %v1755 = vlaneseq
        %v1756 = vshrl.u32 %v1755, 7
        %v1757 = vsub.s32 5, %v1756
        %v1758 = vrot.slane %v1501, %v1757
        %v1759 = vlaneseq
        %v1760 = vshrl.u32 %v1759, 7
        %v1761 = vsub.s32 5, %v1760
        %v1762 = vrot.slane %v1502, %v1761
        %v1763 = vadd.f32 %v1743, %v1750
        %v1764 = vadd.f32 %v1744, %v1754
        %v1765 = vadd.f32 %v1745, %v1758
        %v1766 = vadd.f32 %v1746, %v1762
        %v1767 = vmax.f32 %v1727, %v1763
        %v1768 = vmax.f32 %v1728, %v1764
        %v1769 = vmax.f32 %v1729, %v1765
        %v1770 = vmax.f32 %v1730, %v1766
        %1771 = vrot.lane.b32.xlu0 %v1424, 113
        %v1772 = vpop.permute.xlu0 %1771
        %1773 = vrot.lane.b32.xlu0 %v1426, 113
        %v1774 = vpop.permute.xlu0 %1773
        %1775 = vrot.lane.b32.xlu0 %v1495, 113
        %v1776 = vpop.permute.xlu0 %1775
        %1777 = vrot.lane.b32.xlu0 %v1497, 113
        %v1778 = vpop.permute.xlu0 %1777
        %v1779 = vsel %vm759, %v1776, %v1778
        %v1780 = vsel %vm759, %v1774, %v1776
        %v1781 = vsel %vm759, %v1772, %v1774
        %v1782 = vsel %vm759, %v1778, %v1772
        %v1783 = vmul.f32 %v1781, %v767
        %v1784 = vmul.f32 %v1780, %v771
        %v1785 = vmul.f32 %v1779, %v775
        %v1786 = vmul.f32 %v1782, %v779
        %v1787 = vlaneseq
        %v1788 = vshrl.u32 %v1787, 7
        %v1789 = vsub.s32 6, %v1788
        %v1790 = vrot.slane %v1499, %v1789
        %v1791 = vlaneseq
        %v1792 = vshrl.u32 %v1791, 7
        %v1793 = vsub.s32 6, %v1792
        %v1794 = vrot.slane %v1500, %v1793
        %v1795 = vlaneseq
        %v1796 = vshrl.u32 %v1795, 7
        %v1797 = vsub.s32 6, %v1796
        %v1798 = vrot.slane %v1501, %v1797
        %v1799 = vlaneseq
        %v1800 = vshrl.u32 %v1799, 7
        %v1801 = vsub.s32 6, %v1800
        %v1802 = vrot.slane %v1502, %v1801
        %v1803 = vadd.f32 %v1783, %v1790
        %v1804 = vadd.f32 %v1784, %v1794
        %v1805 = vadd.f32 %v1785, %v1798
        %v1806 = vadd.f32 %v1786, %v1802
        %v1807 = vmax.f32 %v1767, %v1803
        %v1808 = vmax.f32 %v1768, %v1804
        %v1809 = vmax.f32 %v1769, %v1805
        %v1810 = vmax.f32 %v1770, %v1806
        %1811 = vrot.lane.b32.xlu0 %v1424, 112
        %v1812 = vpop.permute.xlu0 %1811
        %1813 = vrot.lane.b32.xlu0 %v1426, 112
        %v1814 = vpop.permute.xlu0 %1813
        %1815 = vrot.lane.b32.xlu0 %v1495, 112
        %v1816 = vpop.permute.xlu0 %1815
        %1817 = vrot.lane.b32.xlu0 %v1497, 112
        %v1818 = vpop.permute.xlu0 %1817
        %v1819 = vsel %vm810, %v1816, %v1818
        %v1820 = vsel %vm810, %v1814, %v1816
        %v1821 = vsel %vm810, %v1812, %v1814
        %v1822 = vsel %vm810, %v1818, %v1812
        %v1823 = vmul.f32 %v1821, %v818
        %v1824 = vmul.f32 %v1820, %v822
        %v1825 = vmul.f32 %v1819, %v826
        %v1826 = vmul.f32 %v1822, %v830
        %v1827 = vlaneseq
        %v1828 = vshrl.u32 %v1827, 7
        %v1829 = vsub.s32 7, %v1828
        %v1830 = vrot.slane %v1499, %v1829
        %v1831 = vlaneseq
        %v1832 = vshrl.u32 %v1831, 7
        %v1833 = vsub.s32 7, %v1832
        %v1834 = vrot.slane %v1500, %v1833
        %v1835 = vlaneseq
        %v1836 = vshrl.u32 %v1835, 7
        %v1837 = vsub.s32 7, %v1836
        %v1838 = vrot.slane %v1501, %v1837
        %v1839 = vlaneseq
        %v1840 = vshrl.u32 %v1839, 7
        %v1841 = vsub.s32 7, %v1840
        %v1842 = vrot.slane %v1502, %v1841
        %v1843 = vadd.f32 %v1823, %v1830
        %v1844 = vadd.f32 %v1824, %v1834
        %v1845 = vadd.f32 %v1825, %v1838
        %v1846 = vadd.f32 %v1826, %v1842
        %v1847 = vmax.f32 %v1807, %v1843
        %v1848 = vmax.f32 %v1808, %v1844
        %v1849 = vmax.f32 %v1809, %v1845
        %v1850 = vmax.f32 %v1810, %v1846
        %1851 = vrot.lane.b32.xlu0 %v1424, 111
        %v1852 = vpop.permute.xlu0 %1851
        %1853 = vrot.lane.b32.xlu0 %v1426, 111
        %v1854 = vpop.permute.xlu0 %1853
        %1855 = vrot.lane.b32.xlu0 %v1495, 111
        %v1856 = vpop.permute.xlu0 %1855
        %1857 = vrot.lane.b32.xlu0 %v1497, 111
        %v1858 = vpop.permute.xlu0 %1857
        %v1859 = vsel %vm861, %v1856, %v1858
        %v1860 = vsel %vm861, %v1854, %v1856
        %v1861 = vsel %vm861, %v1852, %v1854
        %v1862 = vsel %vm861, %v1858, %v1852
        %v1863 = vmul.f32 %v1861, %v869
        %v1864 = vmul.f32 %v1860, %v873
        %v1865 = vmul.f32 %v1859, %v877
        %v1866 = vmul.f32 %v1862, %v881
        %v1867 = vlaneseq
        %v1868 = vshrl.u32 %v1867, 7
        %v1869 = vsub.s32 0, %v1868
        %v1870 = vrot.slane %v1503, %v1869
        %v1871 = vlaneseq
        %v1872 = vshrl.u32 %v1871, 7
        %v1873 = vsub.s32 0, %v1872
        %v1874 = vrot.slane %v1504, %v1873
        %v1875 = vlaneseq
        %v1876 = vshrl.u32 %v1875, 7
        %v1877 = vsub.s32 0, %v1876
        %v1878 = vrot.slane %v1505, %v1877
        %v1879 = vlaneseq
        %v1880 = vshrl.u32 %v1879, 7
        %v1881 = vsub.s32 0, %v1880
        %v1882 = vrot.slane %v1506, %v1881
        %v1883 = vadd.f32 %v1863, %v1870
        %v1884 = vadd.f32 %v1864, %v1874
        %v1885 = vadd.f32 %v1865, %v1878
        %v1886 = vadd.f32 %v1866, %v1882
        %v1887 = vmax.f32 %v1847, %v1883
        %v1888 = vmax.f32 %v1848, %v1884
        %v1889 = vmax.f32 %v1849, %v1885
        %v1890 = vmax.f32 %v1850, %v1886
        %1891 = vmatprep.subr.mxu0 0.0
        %1892 = vmatpush1.msra.mxu0 %v1507
        %1893 = vmatprep.subr.mxu0 0.0
        %1894 = vmatpush1.msra.mxu0 %v1508
        %1895 = vmatprep.subr.mxu0 0.0
        %1896 = vmatpush1.msra.mxu0 %v1509
        %1897 = vmatprep.subr.mxu0 0.0
        %1898 = vmatpush1.msra.mxu0 %v1510
        %1899 = vmatprep.subr.mxu0 0.0
        %1900 = vmatpush1.msra.mxu0 %v1511
        %1901 = vmatprep.subr.mxu0 0.0
        %1902 = vmatpush1.msra.mxu0 %v1512
        %1903 = vmatprep.subr.mxu0 0.0
        %1904 = vmatpush1.msra.mxu0 %v1513
        %1905 = vmatprep.subr.mxu0 0.0
        %1906 = vmatpush1.msra.mxu0 %v1514
        %1907 = vmatprep.subr.mxu0 0.0
        %1908 = vmatpush1.msra.mxu0 %v1515
        %1909 = vmatprep.subr.mxu0 0.0
        %1910 = vmatpush1.msra.mxu0 %v1516
        %1911 = vmatprep.subr.mxu0 0.0
        %1912 = vmatpush1.msra.mxu0 %v1517
        %1913 = vmatprep.subr.mxu0 0.0
        %1914 = vmatpush1.msra.mxu0 %v1518
        %1915 = vmatprep.subr.mxu0 0.0
        %1916 = vmatpush1.msra.mxu0 %v1519
        %1917 = vmatprep.subr.mxu0 0.0
        %1918 = vmatpush1.msra.mxu0 %v1520
        %1919 = vmatprep.subr.mxu0 0.0
        %1920 = vmatpush1.msra.mxu0 %v1521
        %1921 = vmatprep.subr.mxu0 0.0
        %1922 = vmatpush1.msra.mxu0 %v1522
        %1923 = vmatprep.subr.mxu0 0.0
        %1924 = vmatpush1.msra.mxu0 %v1523
        %1925 = vmatprep.subr.mxu0 0.0
        %1926 = vmatpush1.msra.mxu0 %v1524
        %1927 = vmatprep.subr.mxu0 0.0
        %1928 = vmatpush1.msra.mxu0 %v1525
        %1929 = vmatprep.subr.mxu0 0.0
        %1930 = vmatpush1.msra.mxu0 %v1526
        %1931 = vmatprep.subr.mxu0 0.0
        %1932 = vmatpush1.msra.mxu0 %v1527
        %1933 = vmatprep.subr.mxu0 0.0
        %1934 = vmatpush1.msra.mxu0 %v1528
        %1935 = vmatprep.subr.mxu0 0.0
        %1936 = vmatpush1.msra.mxu0 %v1529
        %1937 = vmatprep.subr.mxu0 0.0
        %1938 = vmatpush1.msra.mxu0 %v1530
        %1939 = vmatprep.subr.mxu0 0.0
        %1940 = vmatpush1.msra.mxu0 %v1531
        %1941 = vmatprep.subr.mxu0 0.0
        %1942 = vmatpush1.msra.mxu0 %v1532
        %1943 = vmatprep.subr.mxu0 0.0
        %1944 = vmatpush1.msra.mxu0 %v1533
        %1945 = vmatprep.subr.mxu0 0.0
        %1946 = vmatpush1.msra.mxu0 %v1534
        %1947 = vmatprep.subr.mxu0 0.0
        %1948 = vmatpush1.msra.mxu0 %v1535
        %1949 = vmatprep.subr.mxu0 0.0
        %1950 = vmatpush1.msra.mxu0 %v1536
        %1951 = vmatprep.subr.mxu0 0.0
        %1952 = vmatpush1.msra.mxu0 %v1537
        %1953 = vmatprep.subr.mxu0 0.0
        %1954 = vmatpush1.msra.mxu0 %v1538
        %1955 = vmatprep.mubr.f32.mxu0 %v490
        %1956 = vmatmul.mubr.f32.gmra.mrb[0].mxu0 %v469
        %v1957 = vpop.f32.mrb[0].mxu0
        %v1958 = vadd.f32 0.0, %v1957
        %v1959 = vpop.f32.mrb[0].mxu0
        %1960 = vdwg.mxu0
        %1961 = vmatprep.subr.mxu0 0.0
        %1962 = vmatpush1.msra.mxu0 %v1539
        %1963 = vmatprep.subr.mxu0 0.0
        %1964 = vmatpush1.msra.mxu0 %v1540
        %1965 = vmatprep.subr.mxu0 0.0
        %1966 = vmatpush1.msra.mxu0 %v1541
        %1967 = vmatprep.subr.mxu0 0.0
        %1968 = vmatpush1.msra.mxu0 %v1542
        %1969 = vmatprep.subr.mxu0 0.0
        %1970 = vmatpush1.msra.mxu0 %v1543
        %1971 = vmatprep.subr.mxu0 0.0
        %1972 = vmatpush1.msra.mxu0 %v1544
        %1973 = vmatprep.subr.mxu0 0.0
        %1974 = vmatpush1.msra.mxu0 %v1545
        %1975 = vmatprep.subr.mxu0 0.0
        %1976 = vmatpush1.msra.mxu0 %v1546
        %1977 = vmatprep.subr.mxu0 0.0
        %1978 = vmatpush1.msra.mxu0 %v1547
        %1979 = vmatprep.subr.mxu0 0.0
        %1980 = vmatpush1.msra.mxu0 %v1548
        %1981 = vmatprep.subr.mxu0 0.0
        %1982 = vmatpush1.msra.mxu0 %v1549
        %1983 = vmatprep.subr.mxu0 0.0
        %1984 = vmatpush1.msra.mxu0 %v1550
        %1985 = vmatprep.subr.mxu0 0.0
        %1986 = vmatpush1.msra.mxu0 %v1551
        %1987 = vmatprep.subr.mxu0 0.0
        %1988 = vmatpush1.msra.mxu0 %v1552
        %1989 = vmatprep.subr.mxu0 0.0
        %1990 = vmatpush1.msra.mxu0 %v1553
        %1991 = vmatprep.subr.mxu0 0.0
        %1992 = vmatpush1.msra.mxu0 %v1554
        %1993 = vmatprep.subr.mxu0 0.0
        %1994 = vmatpush1.msra.mxu0 %v1555
        %1995 = vmatprep.subr.mxu0 0.0
        %1996 = vmatpush1.msra.mxu0 %v1556
        %1997 = vmatprep.subr.mxu0 0.0
        %1998 = vmatpush1.msra.mxu0 %v1557
        %1999 = vmatprep.subr.mxu0 0.0
        %2000 = vmatpush1.msra.mxu0 %v1558
        %2001 = vmatprep.subr.mxu0 0.0
        %2002 = vmatpush1.msra.mxu0 %v1559
        %2003 = vmatprep.subr.mxu0 0.0
        %2004 = vmatpush1.msra.mxu0 %v1560
        %2005 = vmatprep.subr.mxu0 0.0
        %2006 = vmatpush1.msra.mxu0 %v1561
        %2007 = vmatprep.subr.mxu0 0.0
        %2008 = vmatpush1.msra.mxu0 %v1562
        %2009 = vmatprep.subr.mxu0 0.0
        %2010 = vmatpush1.msra.mxu0 %v1563
        %2011 = vmatprep.subr.mxu0 0.0
        %2012 = vmatpush1.msra.mxu0 %v1564
        %2013 = vmatprep.subr.mxu0 0.0
        %2014 = vmatpush1.msra.mxu0 %v1565
        %2015 = vmatprep.subr.mxu0 0.0
        %2016 = vmatpush1.msra.mxu0 %v1566
        %2017 = vmatprep.subr.mxu0 0.0
        %2018 = vmatpush1.msra.mxu0 %v1567
        %2019 = vmatprep.subr.mxu0 0.0
        %2020 = vmatpush1.msra.mxu0 %v1568
        %2021 = vmatprep.subr.mxu0 0.0
        %2022 = vmatpush1.msra.mxu0 %v1569
        %2023 = vmatprep.subr.mxu0 0.0
        %2024 = vmatpush1.msra.mxu0 %v1570
        %2025 = vmatprep.mubr.f32.mxu0 %v491
        %2026 = vmatmul.mubr.f32.gmra.mrb[0].mxu0 %v470
        %v2027 = vpop.f32.mrb[0].mxu0
        %v2028 = vadd.f32 %v1958, %v2027
        %v2029 = vpop.f32.mrb[0].mxu0
        %2030 = vdwg.mxu0
        %v2031 = vld [vmem:[%s8] sm:$0xff]
        %2033 = vset.pattern.permute.xlu0 0
        %2034 = vperm.xlu0 %2033, %v2031
        %v2035 = vpop.permute.xlu0 %2034
        %v2037 = vlaneseq
        %v2038 = vshrl.u32 %v2037, 7
        %v2039 = vsub.s32 0, %v2038
        %v2040 = vrot.slane %v2028, %v2039
        %v2041 = vmul.f32 %v2035, %v2040
        %v2042 = vadd.f32 %v2041, 0.0
        %2043 = vset.pattern.permute.xlu0 1
        %2044 = vperm.xlu0 %2043, %v2031
        %v2045 = vpop.permute.xlu0 %2044
        %v2047 = vlaneseq
        %v2048 = vshrl.u32 %v2047, 7
        %v2049 = vsub.s32 1, %v2048
        %v2050 = vrot.slane %v2028, %v2049
        %v2051 = vmul.f32 %v2045, %v2050
        %v2052 = vadd.f32 %v2042, %v2051
        %2053 = vset.pattern.permute.xlu0 2
        %2054 = vperm.xlu0 %2053, %v2031
        %v2055 = vpop.permute.xlu0 %2054
        %v2057 = vlaneseq
        %v2058 = vshrl.u32 %v2057, 7
        %v2059 = vsub.s32 2, %v2058
        %v2060 = vrot.slane %v2028, %v2059
        %v2061 = vmul.f32 %v2055, %v2060
        %v2062 = vadd.f32 %v2052, %v2061
        %2063 = vset.pattern.permute.xlu0 3
        %2064 = vperm.xlu0 %2063, %v2031
        %v2065 = vpop.permute.xlu0 %2064
        %v2067 = vlaneseq
        %v2068 = vshrl.u32 %v2067, 7
        %v2069 = vsub.s32 3, %v2068
        %v2070 = vrot.slane %v2028, %v2069
        %v2071 = vmul.f32 %v2065, %v2070
        %v2072 = vadd.f32 %v2062, %v2071
        %2073 = vmatprep.subr.mxu0 0.0
        %2074 = vmatpush1.msra.mxu0 %v1507
        %2075 = vmatprep.subr.mxu0 0.0
        %2076 = vmatpush1.msra.mxu0 %v1508
        %2077 = vmatprep.subr.mxu0 0.0
        %2078 = vmatpush1.msra.mxu0 %v1509
        %2079 = vmatprep.subr.mxu0 0.0
        %2080 = vmatpush1.msra.mxu0 %v1510
        %2081 = vmatprep.subr.mxu0 0.0
        %2082 = vmatpush1.msra.mxu0 %v1511
        %2083 = vmatprep.subr.mxu0 0.0
        %2084 = vmatpush1.msra.mxu0 %v1512
        %2085 = vmatprep.subr.mxu0 0.0
        %2086 = vmatpush1.msra.mxu0 %v1513
        %2087 = vmatprep.subr.mxu0 0.0
        %2088 = vmatpush1.msra.mxu0 %v1514
        %2089 = vmatprep.subr.mxu0 0.0
        %2090 = vmatpush1.msra.mxu0 %v1515
        %2091 = vmatprep.subr.mxu0 0.0
        %2092 = vmatpush1.msra.mxu0 %v1516
        %2093 = vmatprep.subr.mxu0 0.0
        %2094 = vmatpush1.msra.mxu0 %v1517
        %2095 = vmatprep.subr.mxu0 0.0
        %2096 = vmatpush1.msra.mxu0 %v1518
        %2097 = vmatprep.subr.mxu0 0.0
        %2098 = vmatpush1.msra.mxu0 %v1519
        %2099 = vmatprep.subr.mxu0 0.0
        %2100 = vmatpush1.msra.mxu0 %v1520
        %2101 = vmatprep.subr.mxu0 0.0
        %2102 = vmatpush1.msra.mxu0 %v1521
        %2103 = vmatprep.subr.mxu0 0.0
        %2104 = vmatpush1.msra.mxu0 %v1522
        %2105 = vmatprep.subr.mxu0 0.0
        %2106 = vmatpush1.msra.mxu0 %v1523
        %2107 = vmatprep.subr.mxu0 0.0
        %2108 = vmatpush1.msra.mxu0 %v1524
        %2109 = vmatprep.subr.mxu0 0.0
        %2110 = vmatpush1.msra.mxu0 %v1525
        %2111 = vmatprep.subr.mxu0 0.0
        %2112 = vmatpush1.msra.mxu0 %v1526
        %2113 = vmatprep.subr.mxu0 0.0
        %2114 = vmatpush1.msra.mxu0 %v1527
        %2115 = vmatprep.subr.mxu0 0.0
        %2116 = vmatpush1.msra.mxu0 %v1528
        %2117 = vmatprep.subr.mxu0 0.0
        %2118 = vmatpush1.msra.mxu0 %v1529
        %2119 = vmatprep.subr.mxu0 0.0
        %2120 = vmatpush1.msra.mxu0 %v1530
        %2121 = vmatprep.subr.mxu0 0.0
        %2122 = vmatpush1.msra.mxu0 %v1531
        %2123 = vmatprep.subr.mxu0 0.0
        %2124 = vmatpush1.msra.mxu0 %v1532
        %2125 = vmatprep.subr.mxu0 0.0
        %2126 = vmatpush1.msra.mxu0 %v1533
        %2127 = vmatprep.subr.mxu0 0.0
        %2128 = vmatpush1.msra.mxu0 %v1534
        %2129 = vmatprep.subr.mxu0 0.0
        %2130 = vmatpush1.msra.mxu0 %v1535
        %2131 = vmatprep.subr.mxu0 0.0
        %2132 = vmatpush1.msra.mxu0 %v1536
        %2133 = vmatprep.subr.mxu0 0.0
        %2134 = vmatpush1.msra.mxu0 %v1537
        %2135 = vmatprep.subr.mxu0 0.0
        %2136 = vmatpush1.msra.mxu0 %v1538
        %2137 = vmatprep.mubr.f32.mxu0 %v1888
        %2138 = vmatmul.mubr.f32.gmra.mrb[0].mxu0 %v1887
        %v2139 = vpop.f32.mrb[0].mxu0
        %v2140 = vadd.f32 %v2072, %v2139
        %v2141 = vpop.f32.mrb[0].mxu0
        %2142 = vdwg.mxu0
        %2143 = vmatprep.subr.mxu0 0.0
        %2144 = vmatpush1.msra.mxu0 %v1539
        %2145 = vmatprep.subr.mxu0 0.0
        %2146 = vmatpush1.msra.mxu0 %v1540
        %2147 = vmatprep.subr.mxu0 0.0
        %2148 = vmatpush1.msra.mxu0 %v1541
        %2149 = vmatprep.subr.mxu0 0.0
        %2150 = vmatpush1.msra.mxu0 %v1542
        %2151 = vmatprep.subr.mxu0 0.0
        %2152 = vmatpush1.msra.mxu0 %v1543
        %2153 = vmatprep.subr.mxu0 0.0
        %2154 = vmatpush1.msra.mxu0 %v1544
        %2155 = vmatprep.subr.mxu0 0.0
        %2156 = vmatpush1.msra.mxu0 %v1545
        %2157 = vmatprep.subr.mxu0 0.0
        %2158 = vmatpush1.msra.mxu0 %v1546
        %2159 = vmatprep.subr.mxu0 0.0
        %2160 = vmatpush1.msra.mxu0 %v1547
        %2161 = vmatprep.subr.mxu0 0.0
        %2162 = vmatpush1.msra.mxu0 %v1548
        %2163 = vmatprep.subr.mxu0 0.0
        %2164 = vmatpush1.msra.mxu0 %v1549
        %2165 = vmatprep.subr.mxu0 0.0
        %2166 = vmatpush1.msra.mxu0 %v1550
        %2167 = vmatprep.subr.mxu0 0.0
        %2168 = vmatpush1.msra.mxu0 %v1551
        %2169 = vmatprep.subr.mxu0 0.0
        %2170 = vmatpush1.msra.mxu0 %v1552
        %2171 = vmatprep.subr.mxu0 0.0
        %2172 = vmatpush1.msra.mxu0 %v1553
        %2173 = vmatprep.subr.mxu0 0.0
        %2174 = vmatpush1.msra.mxu0 %v1554
        %2175 = vmatprep.subr.mxu0 0.0
        %2176 = vmatpush1.msra.mxu0 %v1555
        %2177 = vmatprep.subr.mxu0 0.0
        %2178 = vmatpush1.msra.mxu0 %v1556
        %2179 = vmatprep.subr.mxu0 0.0
        %2180 = vmatpush1.msra.mxu0 %v1557
        %2181 = vmatprep.subr.mxu0 0.0
        %2182 = vmatpush1.msra.mxu0 %v1558
        %2183 = vmatprep.subr.mxu0 0.0
        %2184 = vmatpush1.msra.mxu0 %v1559
        %2185 = vmatprep.subr.mxu0 0.0
        %2186 = vmatpush1.msra.mxu0 %v1560
        %2187 = vmatprep.subr.mxu0 0.0
        %2188 = vmatpush1.msra.mxu0 %v1561
        %2189 = vmatprep.subr.mxu0 0.0
        %2190 = vmatpush1.msra.mxu0 %v1562
        %2191 = vmatprep.subr.mxu0 0.0
        %2192 = vmatpush1.msra.mxu0 %v1563
        %2193 = vmatprep.subr.mxu0 0.0
        %2194 = vmatpush1.msra.mxu0 %v1564
        %2195 = vmatprep.subr.mxu0 0.0
        %2196 = vmatpush1.msra.mxu0 %v1565
        %2197 = vmatprep.subr.mxu0 0.0
        %2198 = vmatpush1.msra.mxu0 %v1566
        %2199 = vmatprep.subr.mxu0 0.0
        %2200 = vmatpush1.msra.mxu0 %v1567
        %2201 = vmatprep.subr.mxu0 0.0
        %2202 = vmatpush1.msra.mxu0 %v1568
        %2203 = vmatprep.subr.mxu0 0.0
        %2204 = vmatpush1.msra.mxu0 %v1569
        %2205 = vmatprep.subr.mxu0 0.0
        %2206 = vmatpush1.msra.mxu0 %v1570
        %2207 = vmatprep.mubr.f32.mxu0 %v1890
        %2208 = vmatmul.mubr.f32.gmra.mrb[0].mxu0 %v1889
        %v2209 = vpop.f32.mrb[0].mxu0
        %v2210 = vadd.f32 %v2140, %v2209
        %v2211 = vpop.f32.mrb[0].mxu0
        %2212 = vdwg.mxu0
        %v2213 = vld [vmem:[%s9] sm:$0xff]
        %2215 = vset.pattern.permute.xlu0 0
        %2216 = vperm.xlu0 %2215, %v2213
        %v2217 = vpop.permute.xlu0 %2216
        %v2219 = vadd.f32 %v2210, %v2217
        %2220 = vst [vmem:[%s458] sm:$0xff] %v2219
        %s2221 = sand.u32 %s295, 1
        %s2222 = scalar_lea.sflag [#allocation4], %s2221
        %s2223 = sand.u32 %s295, 1
        %s2224 = smul.addr %s2223, 8
        %s2225 = scalar_lea.vmem [#allocation8], %s2224
        // Predicated region
        $region81: #{tpu_custom_call.1} parent=67 // pred_check
          %p2226 = pneg %p305
        $region82: #{tpu_custom_call.1} parent=67 // pred_check_branch
          %2228 = sbr.rel (%p2226) target = $region84
        $region83: #{tpu_custom_call.1} parent=67 // pred_region
          %s2230 = ssub.s32 128, 128
          %2231 = vsyncadd %s2222, %s2230
          %s2232 = smul.addr %s30, 128
          %s2233 = scalar_lea.hbm %s12, %s2232
          %s2235 = sshll.u32 %s2225, 4
          %s2236 = int_to_ptr.vmem [resolvable:$true] %s2235
          %2238 = dma.vmem_to_hbm [thread:$0]  %s2236, 128, %s2233, %s2222
        $region84: #{tpu_custom_call.1} parent=67 // pred_fallthru
          _
      $region68: #{tpu_custom_call.1} parent=5 // pred_fallthru
        _
      %p2239 = scmp.le.s32.totalorder 2, %s25
      // Predicated region
      $region85: #{tpu_custom_call.1} parent=5 // pred_check
        %p2240 = pneg %p2239
      $region86: #{tpu_custom_call.1} parent=5 // pred_check_branch
        %2242 = sbr.rel (%p2240) target = $region88
      $region87: #{tpu_custom_call.1} parent=5 // pred_region
        %s2243 = ssub.s32 %s25, 2
        // Predicated region
        $region89: #{tpu_custom_call.1} parent=87 // pred_check
          %p2244 = pneg %p311
        $region90: #{tpu_custom_call.1} parent=87 // pred_check_branch
          %2246 = sbr.rel (%p2244) target = $region92
        $region91: #{tpu_custom_call.1} parent=87 // pred_region
          %s2247 = sand.u32 %s296, 1
          %s2248 = scalar_lea.sflag [#allocation4], %s2247
          %s2249 = sand.u32 %s296, 1
          %s2250 = smul.addr %s2249, 8
          %s2251 = scalar_lea.vmem [#allocation8], %s2250
          %2252 = dma.done %s2248, 128
        $region92: #{tpu_custom_call.1} parent=87 // pred_fallthru
          _
      $region88: #{tpu_custom_call.1} parent=5 // pred_fallthru
        _
    $region6: #{tpu_custom_call.1} parent=1 // loop_footer
      %s29 = sadd.s32 1, %s25
    $region7: #{tpu_custom_call.1} parent=1 // loop_footer_branch
      %24 = sbr.rel target = $region3
    $region8: #{tpu_custom_call.1} parent=1 // loop_exit
      _
    %2253 = vsyncpa [#allocation3], 1
    %s2254 = scalar_lea.sflag [#allocation3], 1
    %2255 = vsyncpa %s2254, 1
    %2256 = vsyncpa [#allocation6], 1
    %2257 = vsyncpa [#allocation4], 1
    %s2258 = scalar_lea.sflag [#allocation4], 1
    %2259 = vsyncpa %s2258, 1

</llo_original>
